<compile_context>
chip_gen: v6e
topology: v6e:2x2x1
jax: 0.10.0
libtpu: 0.0.40
codegen_flags: <defaults>
</compile_context>

<pallas_src>
import math

import numpy as np
import jax
import jax.numpy as jnp
from jax.experimental import pallas as pl
from jax.experimental.pallas import tpu as pltpu


# ----------------------------- config ----------------------------------------
class Cfg:
    d_model = 32
    d_state = 16
    expand_factor = 2
    seq_length = 9            # module requires odd seq length (overlap-split + concat)
    dt_min = 0.001
    dt_max = 0.1
    dt_init_floor = 1e-4
    d_inner = expand_factor * d_model
    dt_rank = math.ceil(d_model / 16)


# ----------------------------- trace-time constants ---------------------------
def gaussian_mask(length):
    # identical to the PyTorch reference: center = (length + 1) // 2
    center = (length + 1) // 2
    idx = np.arange(length, dtype=np.float32)
    sigma = np.abs(idx - center).mean()
    w = np.exp(-0.5 * (idx - center) ** 2 / sigma ** 2)
    return (w / w.sum()).astype(np.float32)


def adaptive_pool_matrix(l_in, l_out):
    # AdaptiveAvgPool1d as an (l_out, l_in) averaging matrix over the seq axis
    P = np.zeros((l_out, l_in), np.float32)
    for o in range(l_out):
        s = (o * l_in) // l_out
        e = -(-((o + 1) * l_in) // l_out)
        P[o, s:e] = 1.0 / (e - s)
    return P


# ----------------------------- fused kernel -----------------------------------
def _fused_residual_block_kernel(
        x_ref, w_in_ref, pool_ref, mask_f_ref, mask_b_ref,
        wbig_f_ref, ad_f_ref, wbig_b_ref, ad_b_ref,
        pro_to_ref, token_wa_ref, token_wv_ref, w_out_ref,
        o_ref):
    f32 = jnp.float32

    def silu(v):
        return v * (1.0 / (1.0 + jnp.exp(-v)))

    x = x_ref[0]                                   # (L, D)
    L, D = x.shape
    Lh = L // 2 + 1
    dS = ad_f_ref.shape[0] - 1
    dI = ad_f_ref.shape[1]
    G = wbig_f_ref.shape[1] - dI                   # dt_rank + 2*d_state
    R = G - 2 * dS

    # ---- RMSNorm (weight pre-folded into w_in) --------------------------------
    ms = jnp.mean(x * x, axis=-1, keepdims=True)
    xn = x * jax.lax.rsqrt(ms + 1e-5)

    # ---- fused in_proj (x | z), single lane-dense GEMM ------------------------
    xz = jnp.dot(xn, w_in_ref[...], preferred_element_type=f32)   # (L, 2*dI)
    xs = silu(xz[:, :dI])                          # (L, dI)  (silu'd once for both halves)
    zin = xz[:, dI:]                               # (L, dI)

    # ---- selective scan (state lane-major: (dS, dI)) ---------------------------
    # For reverse=True the unrolled recurrence walks memory rows back-to-front,
    # which yields the output rows directly in the "flipped input, natural scan"
    # order used by the PyTorch reference (no reordering / flips needed).
    def ssm_branch(xh, wbig_ref, ad_ref, reverse):
        wb = wbig_ref[...]                                           # (dI+1, G+dI)
        gbc = jnp.dot(xh, wb[:dI, :], preferred_element_type=f32) + wb[dI:dI + 1, :]
        Bm = gbc[:, R:R + dS]                                        # (Lh, dS)
        Cm = gbc[:, R + dS:R + 2 * dS]                               # (Lh, dS)
        dt = gbc[:, G:]                                              # (Lh, dI) pre-softplus
        # softplus (threshold=20, matching F.softplus)
        dt = jnp.where(dt > 20.0, dt, jnp.log1p(jnp.exp(jnp.minimum(dt, 20.0))))

        ad = ad_ref[...]
        AT = ad[:dS, :]                                              # (dS, dI) == A^T
        Dv = ad[dS:dS + 1, :]                                        # (1, dI)

        dA = jnp.exp(dt[:, None, :] * AT[None, :, :])                # (Lh, dS, dI)
        dBx = (dt * xh)[:, None, :] * Bm[:, :, None]                 # (Lh, dS, dI)
        CmE = Cm[:, :, None]                                         # (Lh, dS, 1)

        order = range(Lh - 1, -1, -1) if reverse else range(Lh)
        h = jnp.zeros((dS, dI), f32)
        ys = []
        for j in order:                           # static unroll (Lh is small)
            h = dA[j] * h + dBx[j]
            ys.append(jnp.sum(h * CmE[j], axis=0, keepdims=True) + Dv * xh[j:j + 1, :])
        return jnp.concatenate(ys, axis=0)        # (Lh, dI), rows in scan order

    y_f = ssm_branch(xs[:Lh, :], wbig_f_ref, ad_f_ref, reverse=False)
    y_b = ssm_branch(xs[Lh - 1:, :], wbig_b_ref, ad_b_ref, reverse=True)

    # ---- gaussian-masked concat + pro_to (+ second mask multiply) --------------
    y_cat = jnp.concatenate([y_f * mask_f_ref[...], y_b * mask_b_ref[...]], axis=-1)
    pt = pro_to_ref[...]                                             # (2*dI+1, dI)
    y = jnp.dot(y_cat, pt[:2 * dI, :], preferred_element_type=f32) + pt[2 * dI:, :]
    y = y * mask_f_ref[...]

    # ---- tokenizer ('f' direction) ---------------------------------------------
    # TODO(synk): tokenizer_dropout is eval-mode identity (training dropout not modeled)
    att = jax.lax.dot_general(token_wa_ref[...], y, (((0,), (1,)), ((), ())),
                              preferred_element_type=f32)            # (S, Lh)
    att = att - jnp.max(att, axis=-1, keepdims=True)
    e = jnp.exp(att)
    att = e / jnp.sum(e, axis=-1, keepdims=True)
    vv = jnp.dot(y, token_wv_ref[...], preferred_element_type=f32)   # (Lh, dI)
    tok = jnp.dot(att, vv, preferred_element_type=f32)               # (S, dI)

    # ---- adaptive pool of z gate and of raw-x residual in one GEMM -------------
    pooled = jnp.dot(pool_ref[...], jnp.concatenate([zin, x], axis=-1),
                     preferred_element_type=f32)                     # (S, dI + D)
    z = silu(pooled[:, :dI])
    xp = pooled[:, dI:]

    # ---- fused final GEMM: out_proj(tok*z) + pro(adapool(x)) + pro_b -----------
    wo = w_out_ref[...]                                              # (dI+D+1, D)
    fin = jnp.concatenate([tok * z, xp], axis=-1)                    # (S, dI + D)
    out = jnp.dot(fin, wo[:dI + D, :], preferred_element_type=f32) + wo[dI + D:, :]
    o_ref[0] = out.astype(o_ref.dtype)


# ----------------------------- wrapper ----------------------------------------
def residual_block(p, x):
    B, L, D = x.shape
    S = Cfg.seq_length
    Lh = L // 2 + 1
    dI = Cfg.d_inner
    dS = Cfg.d_state
    R = Cfg.dt_rank
    f32 = jnp.float32

    # --- trace-time parameter repacking (tiny; fuses into a few cheap XLA ops) ---
    w_in = jnp.concatenate([p["in_proj_x_w"], p["in_proj_z_w"]], axis=1)   # (D, 2*dI)
    w_in = p["norm_w"][:, None] * w_in          # fold RMSNorm weight into in_proj

    pool = jnp.asarray(adaptive_pool_matrix(L, S))                          # (S, L)
    m = gaussian_mask(Lh)
    mask_f = jnp.asarray(m.reshape(Lh, 1))
    mask_b = jnp.asarray(np.ascontiguousarray(m[::-1]).reshape(Lh, 1))

    def dir_pack(d):
        Wx = p[f"x_proj_{d}_w"]                 # (dI, G)
        bx = p[f"x_proj_{d}_b"]                 # (G,)
        Wdt = p[f"dt_proj_{d}_w"]               # (R, dI)
        bdt = p[f"dt_proj_{d}_b"]               # (dI,)
        # fold dt_proj into x_proj:  delta@Wdt + bdt == x@(Wx[:, :R]@Wdt) + (bx[:R]@Wdt + bdt)
        Wxdt = jnp.dot(Wx[:, :R], Wdt)                                      # (dI, dI)
        bxdt = jnp.dot(bx[:R], Wdt) + bdt                                   # (dI,)
        wbig = jnp.concatenate(
            [jnp.concatenate([Wx, Wxdt], axis=1),
             jnp.concatenate([bx, bxdt], axis=0)[None, :]], axis=0)         # (dI+1, G+dI)
        AT = jnp.transpose(-jnp.exp(p[f"A_log_{d}"]))                       # (dS, dI)
        ad = jnp.concatenate([AT, p[f"D_{d}"][None, :]], axis=0)            # (dS+1, dI)
        return wbig.astype(f32), ad.astype(f32)

    wbig_f, ad_f = dir_pack("f")
    wbig_b, ad_b = dir_pack("b")

    pro_to = jnp.concatenate([p["pro_to_w"], p["pro_to_b"][None, :]], axis=0)        # (2*dI+1, dI)
    w_out = jnp.concatenate([p["out_proj_w"], p["pro_w"], p["pro_b"][None, :]], axis=0)  # (dI+D+1, D)

    operands = (
        x, w_in, pool, mask_f, mask_b,
        wbig_f, ad_f, wbig_b, ad_b,
        pro_to,
        jnp.transpose(p["token_wA_f"][0]),      # (dI, S)
        p["token_wV_f"][0],                     # (dI, dI)
        w_out,
    )

    def bcast_spec(arr):
        nd = arr.ndim
        return pl.BlockSpec(arr.shape, lambda b: (0,) * nd)

    in_specs = [pl.BlockSpec((1, L, D), lambda b: (b, 0, 0))]
    in_specs += [bcast_spec(a) for a in operands[1:]]

    return pl.pallas_call(
        _fused_residual_block_kernel,
        grid=(B,),
        in_specs=in_specs,
        out_specs=pl.BlockSpec((1, S, D), lambda b: (b, 0, 0)),
        out_shape=jax.ShapeDtypeStruct((B, S, D), f32),
        compiler_params=pltpu.CompilerParams(dimension_semantics=("parallel",)),
    )(*operands)


# ----------------------------- deterministic init ----------------------------
def init_params(key):
    ks = jax.random.split(key, 24)
    it = iter(ks)

    def nrm(shape, scale=0.02):
        return (scale * jax.random.normal(next(it), shape)).astype(jnp.float32)

    dI, D, dS, R, S = Cfg.d_inner, Cfg.d_model, Cfg.d_state, Cfg.dt_rank, Cfg.seq_length
    p = {
        "norm_w": jnp.ones((D,), jnp.float32),
        "pro_w": nrm((D, D)), "pro_b": jnp.zeros((D,), jnp.float32),
        "in_proj_x_w": nrm((D, dI)),
        "in_proj_z_w": nrm((D, dI)),
        "pro_to_w": nrm((2 * dI, dI)), "pro_to_b": jnp.zeros((dI,), jnp.float32),
        "out_proj_w": nrm((dI, D)),
        "token_wA_f": nrm((1, S, dI), 0.1),
        "token_wV_f": nrm((1, dI, dI), 0.1),
    }
    A_log = jnp.tile(jnp.log(jnp.arange(1, dS + 1, dtype=jnp.float32)), (dI, 1))
    for d in ("f", "b"):
        p[f"A_log_{d}"] = A_log
        p[f"D_{d}"] = jnp.ones((dI,), jnp.float32)
        p[f"x_proj_{d}_w"] = nrm((dI, R + 2 * dS))
        p[f"x_proj_{d}_b"] = jnp.zeros((R + 2 * dS,), jnp.float32)
        std = R ** -0.5
        p[f"dt_proj_{d}_w"] = jax.random.uniform(next(it), (R, dI), jnp.float32, -std, std)
        dt = jnp.clip(
            jnp.exp(jax.random.uniform(next(it), (dI,), jnp.float32)
                    * (math.log(Cfg.dt_max) - math.log(Cfg.dt_min))
                    + math.log(Cfg.dt_min)),
            Cfg.dt_init_floor, None)
        p[f"dt_proj_{d}_b"] = dt + jnp.log(-jnp.expm1(-dt))
    return p


# ----------------------------- main -------------------------------------------
if __name__ == "__main__":
    key = jax.random.PRNGKey(0)
    pkey, xkey = jax.random.split(key)
    params = init_params(pkey)

    B, L, D = 2, Cfg.seq_length, Cfg.d_model   # L must be odd for the overlap-split
    x = jax.random.normal(xkey, (B, L, D), jnp.float32)

    out = jax.jit(residual_block)(params, x)
    out = jax.block_until_ready(out)

    assert out.shape == (B, Cfg.seq_length, D), out.shape
    assert bool(jnp.all(jnp.isfinite(out)))
    print("KERNEL_OK")
</pallas_src>

<mosaic_0001>
module attributes {stable_mosaic.version = 11 : i64} {
  func.func @_fused_residual_block_kernel(%arg0: i32, %arg1: memref<1x9x32xf32, #tpu.memory_space<vmem>>, %arg2: memref<32x128xf32, #tpu.memory_space<vmem>>, %arg3: memref<9x9xf32, #tpu.memory_space<vmem>>, %arg4: memref<5x1xf32, #tpu.memory_space<vmem>>, %arg5: memref<5x1xf32, #tpu.memory_space<vmem>>, %arg6: memref<65x98xf32, #tpu.memory_space<vmem>>, %arg7: memref<17x64xf32, #tpu.memory_space<vmem>>, %arg8: memref<65x98xf32, #tpu.memory_space<vmem>>, %arg9: memref<17x64xf32, #tpu.memory_space<vmem>>, %arg10: memref<129x64xf32, #tpu.memory_space<vmem>>, %arg11: memref<64x9xf32, #tpu.memory_space<vmem>>, %arg12: memref<64x64xf32, #tpu.memory_space<vmem>>, %arg13: memref<97x32xf32, #tpu.memory_space<vmem>>, %arg14: memref<1x9x32xf32, #tpu.memory_space<vmem>>) attributes {dimension_semantics = [#tpu.dimension_semantics<parallel>], iteration_bounds = array<i64: 2>, scalar_prefetch = 0 : i64, scratch_operands = 0 : i64, tpu.core_type = #tpu.core_type<tc>, window_params = [{transform_indices = @transform_0, window_bounds = array<i64: 1, 9, 32>}, {pipeline_mode = #tpu.pipeline_mode<synchronous>, transform_indices = @transform_1, window_bounds = array<i64: 32, 128>}, {pipeline_mode = #tpu.pipeline_mode<synchronous>, transform_indices = @transform_2, window_bounds = array<i64: 9, 9>}, {pipeline_mode = #tpu.pipeline_mode<synchronous>, transform_indices = @transform_3, window_bounds = array<i64: 5, 1>}, {pipeline_mode = #tpu.pipeline_mode<synchronous>, transform_indices = @transform_4, window_bounds = array<i64: 5, 1>}, {pipeline_mode = #tpu.pipeline_mode<synchronous>, transform_indices = @transform_5, window_bounds = array<i64: 65, 98>}, {pipeline_mode = #tpu.pipeline_mode<synchronous>, transform_indices = @transform_6, window_bounds = array<i64: 17, 64>}, {pipeline_mode = #tpu.pipeline_mode<synchronous>, transform_indices = @transform_7, window_bounds = array<i64: 65, 98>}, {pipeline_mode = #tpu.pipeline_mode<synchronous>, transform_indices = @transform_8, window_bounds = array<i64: 17, 64>}, {pipeline_mode = #tpu.pipeline_mode<synchronous>, transform_indices = @transform_9, window_bounds = array<i64: 129, 64>}, {pipeline_mode = #tpu.pipeline_mode<synchronous>, transform_indices = @transform_10, window_bounds = array<i64: 64, 9>}, {pipeline_mode = #tpu.pipeline_mode<synchronous>, transform_indices = @transform_11, window_bounds = array<i64: 64, 64>}, {pipeline_mode = #tpu.pipeline_mode<synchronous>, transform_indices = @transform_12, window_bounds = array<i64: 97, 32>}, {transform_indices = @transform_13, window_bounds = array<i64: 1, 9, 32>}]} {
    %c0 = arith.constant 0 : index
    %c0_0 = arith.constant 0 : index
    %c0_1 = arith.constant 0 : index
    %0 = vector.load %arg1[%c0, %c0_0, %c0_1] : memref<1x9x32xf32, #tpu.memory_space<vmem>>, vector<1x9x32xf32>
    %1 = vector.shape_cast %0 : vector<1x9x32xf32> to vector<9x32xf32>
    %2 = arith.mulf %1, %1 : vector<9x32xf32>
    %cst = arith.constant dense<0.000000e+00> : vector<9xf32>
    %3 = vector.multi_reduction <add>, %2, %cst [1] : vector<9x32xf32> to vector<9xf32>
    %4 = vector.shape_cast %3 : vector<9xf32> to vector<9x1xf32>
    %cst_2 = arith.constant 3.200000e+01 : f32
    %5 = vector.broadcast %cst_2 : f32 to vector<9x1xf32>
    %6 = arith.divf %4, %5 : vector<9x1xf32>
    %cst_3 = arith.constant 9.99999974E-6 : f32
    %7 = vector.broadcast %cst_3 : f32 to vector<9x1xf32>
    %8 = arith.addf %6, %7 : vector<9x1xf32>
    %9 = math.rsqrt %8 : vector<9x1xf32>
    %10 = vector.broadcast %9 : vector<9x1xf32> to vector<9x32xf32>
    %11 = arith.mulf %1, %10 : vector<9x32xf32>
    %c0_4 = arith.constant 0 : index
    %c0_5 = arith.constant 0 : index
    %12 = vector.load %arg2[%c0_4, %c0_5] : memref<32x128xf32, #tpu.memory_space<vmem>>, vector<32x128xf32>
    %cst_6 = arith.constant dense<0.000000e+00> : vector<9x128xf32>
    %13 = tpu.matmul %11, %12, %cst_6 {dimension_numbers = #tpu.dot_dimension_numbers<[1], [0], [0], [1], [0, 0, 1, 1], [], []>} : vector<9x32xf32>, vector<32x128xf32>, vector<9x128xf32> -> vector<9x128xf32>
    %14 = vector.extract_strided_slice %13 {offsets = [0, 0], sizes = [9, 64], strides = [1, 1]} : vector<9x128xf32> to vector<9x64xf32>
    %cst_7 = arith.constant 0.000000e+00 : f32
    %15 = vector.broadcast %cst_7 : f32 to vector<9x64xf32>
    %16 = arith.subf %15, %14 : vector<9x64xf32>
    %17 = math.exp %16 : vector<9x64xf32>
    %cst_8 = arith.constant 1.000000e+00 : f32
    %18 = vector.broadcast %cst_8 : f32 to vector<9x64xf32>
    %19 = arith.addf %18, %17 : vector<9x64xf32>
    %cst_9 = arith.constant 1.000000e+00 : f32
    %20 = vector.broadcast %cst_9 : f32 to vector<9x64xf32>
    %21 = arith.divf %20, %19 : vector<9x64xf32>
    %22 = arith.mulf %14, %21 : vector<9x64xf32>
    %23 = vector.extract_strided_slice %13 {offsets = [0, 64], sizes = [9, 64], strides = [1, 1]} : vector<9x128xf32> to vector<9x64xf32>
    %24 = vector.extract_strided_slice %22 {offsets = [0, 0], sizes = [5, 64], strides = [1, 1]} : vector<9x64xf32> to vector<5x64xf32>
    %c0_10 = arith.constant 0 : index
    %c0_11 = arith.constant 0 : index
    %25 = vector.load %arg6[%c0_10, %c0_11] : memref<65x98xf32, #tpu.memory_space<vmem>>, vector<65x98xf32>
    %26 = vector.extract_strided_slice %25 {offsets = [0, 0], sizes = [64, 98], strides = [1, 1]} : vector<65x98xf32> to vector<64x98xf32>
    %cst_12 = arith.constant dense<0.000000e+00> : vector<5x98xf32>
    %27 = tpu.matmul %24, %26, %cst_12 {dimension_numbers = #tpu.dot_dimension_numbers<[1], [0], [0], [1], [0, 0, 1, 1], [], []>} : vector<5x64xf32>, vector<64x98xf32>, vector<5x98xf32> -> vector<5x98xf32>
    %28 = vector.extract_strided_slice %25 {offsets = [64, 0], sizes = [1, 98], strides = [1, 1]} : vector<65x98xf32> to vector<1x98xf32>
    %29 = vector.broadcast %28 : vector<1x98xf32> to vector<5x98xf32>
    %30 = arith.addf %27, %29 : vector<5x98xf32>
    %31 = vector.extract_strided_slice %30 {offsets = [0, 2], sizes = [5, 16], strides = [1, 1]} : vector<5x98xf32> to vector<5x16xf32>
    %32 = vector.extract_strided_slice %30 {offsets = [0, 18], sizes = [5, 16], strides = [1, 1]} : vector<5x98xf32> to vector<5x16xf32>
    %33 = vector.extract_strided_slice %30 {offsets = [0, 34], sizes = [5, 64], strides = [1, 1]} : vector<5x98xf32> to vector<5x64xf32>
    %cst_13 = arith.constant 2.000000e+01 : f32
    %34 = vector.broadcast %cst_13 : f32 to vector<5x64xf32>
    %35 = arith.cmpf ogt, %33, %34 : vector<5x64xf32>
    %cst_14 = arith.constant 2.000000e+01 : f32
    %36 = vector.broadcast %cst_14 : f32 to vector<5x64xf32>
    %37 = arith.minimumf %33, %36 : vector<5x64xf32>
    %38 = math.exp %37 : vector<5x64xf32>
    %39 = math.log1p %38 : vector<5x64xf32>
    %40 = arith.select %35, %33, %39 : vector<5x64xi1>, vector<5x64xf32>
    %c0_15 = arith.constant 0 : index
    %c0_16 = arith.constant 0 : index
    %41 = vector.load %arg7[%c0_15, %c0_16] : memref<17x64xf32, #tpu.memory_space<vmem>>, vector<17x64xf32>
    %42 = vector.extract_strided_slice %41 {offsets = [0, 0], sizes = [16, 64], strides = [1, 1]} : vector<17x64xf32> to vector<16x64xf32>
    %43 = vector.extract_strided_slice %41 {offsets = [16, 0], sizes = [1, 64], strides = [1, 1]} : vector<17x64xf32> to vector<1x64xf32>
    %44 = vector.shape_cast %40 : vector<5x64xf32> to vector<5x1x64xf32>
    %45 = vector.shape_cast %42 : vector<16x64xf32> to vector<1x16x64xf32>
    %46 = vector.broadcast %44 : vector<5x1x64xf32> to vector<5x16x64xf32>
    %47 = vector.broadcast %45 : vector<1x16x64xf32> to vector<5x16x64xf32>
    %48 = arith.mulf %46, %47 : vector<5x16x64xf32>
    %49 = math.exp %48 : vector<5x16x64xf32>
    %50 = arith.mulf %40, %24 : vector<5x64xf32>
    %51 = vector.shape_cast %50 : vector<5x64xf32> to vector<5x1x64xf32>
    %52 = vector.shape_cast %31 : vector<5x16xf32> to vector<5x16x1xf32>
    %53 = vector.broadcast %51 : vector<5x1x64xf32> to vector<5x16x64xf32>
    %54 = vector.broadcast %52 : vector<5x16x1xf32> to vector<5x16x64xf32>
    %55 = arith.mulf %53, %54 : vector<5x16x64xf32>
    %56 = vector.shape_cast %32 : vector<5x16xf32> to vector<5x16x1xf32>
    %cst_17 = arith.constant 0.000000e+00 : f32
    %57 = vector.broadcast %cst_17 : f32 to vector<16x64xf32>
    %58 = vector.extract_strided_slice %49 {offsets = [0, 0, 0], sizes = [1, 16, 64], strides = [1, 1, 1]} : vector<5x16x64xf32> to vector<1x16x64xf32>
    %59 = vector.shape_cast %58 : vector<1x16x64xf32> to vector<16x64xf32>
    %60 = arith.mulf %59, %57 : vector<16x64xf32>
    %61 = vector.extract_strided_slice %55 {offsets = [0, 0, 0], sizes = [1, 16, 64], strides = [1, 1, 1]} : vector<5x16x64xf32> to vector<1x16x64xf32>
    %62 = vector.shape_cast %61 : vector<1x16x64xf32> to vector<16x64xf32>
    %63 = arith.addf %60, %62 : vector<16x64xf32>
    %64 = vector.extract_strided_slice %56 {offsets = [0, 0, 0], sizes = [1, 16, 1], strides = [1, 1, 1]} : vector<5x16x1xf32> to vector<1x16x1xf32>
    %65 = vector.shape_cast %64 : vector<1x16x1xf32> to vector<16x1xf32>
    %66 = vector.broadcast %65 : vector<16x1xf32> to vector<16x64xf32>
    %67 = arith.mulf %63, %66 : vector<16x64xf32>
    %cst_18 = arith.constant dense<0.000000e+00> : vector<64xf32>
    %68 = vector.multi_reduction <add>, %67, %cst_18 [0] : vector<16x64xf32> to vector<64xf32>
    %69 = vector.shape_cast %68 : vector<64xf32> to vector<1x64xf32>
    %70 = vector.extract_strided_slice %24 {offsets = [0, 0], sizes = [1, 64], strides = [1, 1]} : vector<5x64xf32> to vector<1x64xf32>
    %71 = arith.mulf %43, %70 : vector<1x64xf32>
    %72 = arith.addf %69, %71 : vector<1x64xf32>
    %73 = vector.extract_strided_slice %49 {offsets = [1, 0, 0], sizes = [1, 16, 64], strides = [1, 1, 1]} : vector<5x16x64xf32> to vector<1x16x64xf32>
    %74 = vector.shape_cast %73 : vector<1x16x64xf32> to vector<16x64xf32>
    %75 = arith.mulf %74, %63 : vector<16x64xf32>
    %76 = vector.extract_strided_slice %55 {offsets = [1, 0, 0], sizes = [1, 16, 64], strides = [1, 1, 1]} : vector<5x16x64xf32> to vector<1x16x64xf32>
    %77 = vector.shape_cast %76 : vector<1x16x64xf32> to vector<16x64xf32>
    %78 = arith.addf %75, %77 : vector<16x64xf32>
    %79 = vector.extract_strided_slice %56 {offsets = [1, 0, 0], sizes = [1, 16, 1], strides = [1, 1, 1]} : vector<5x16x1xf32> to vector<1x16x1xf32>
    %80 = vector.shape_cast %79 : vector<1x16x1xf32> to vector<16x1xf32>
    %81 = vector.broadcast %80 : vector<16x1xf32> to vector<16x64xf32>
    %82 = arith.mulf %78, %81 : vector<16x64xf32>
    %cst_19 = arith.constant dense<0.000000e+00> : vector<64xf32>
    %83 = vector.multi_reduction <add>, %82, %cst_19 [0] : vector<16x64xf32> to vector<64xf32>
    %84 = vector.shape_cast %83 : vector<64xf32> to vector<1x64xf32>
    %85 = vector.extract_strided_slice %24 {offsets = [1, 0], sizes = [1, 64], strides = [1, 1]} : vector<5x64xf32> to vector<1x64xf32>
    %86 = arith.mulf %43, %85 : vector<1x64xf32>
    %87 = arith.addf %84, %86 : vector<1x64xf32>
    %88 = vector.extract_strided_slice %49 {offsets = [2, 0, 0], sizes = [1, 16, 64], strides = [1, 1, 1]} : vector<5x16x64xf32> to vector<1x16x64xf32>
    %89 = vector.shape_cast %88 : vector<1x16x64xf32> to vector<16x64xf32>
    %90 = arith.mulf %89, %78 : vector<16x64xf32>
    %91 = vector.extract_strided_slice %55 {offsets = [2, 0, 0], sizes = [1, 16, 64], strides = [1, 1, 1]} : vector<5x16x64xf32> to vector<1x16x64xf32>
    %92 = vector.shape_cast %91 : vector<1x16x64xf32> to vector<16x64xf32>
    %93 = arith.addf %90, %92 : vector<16x64xf32>
    %94 = vector.extract_strided_slice %56 {offsets = [2, 0, 0], sizes = [1, 16, 1], strides = [1, 1, 1]} : vector<5x16x1xf32> to vector<1x16x1xf32>
    %95 = vector.shape_cast %94 : vector<1x16x1xf32> to vector<16x1xf32>
    %96 = vector.broadcast %95 : vector<16x1xf32> to vector<16x64xf32>
    %97 = arith.mulf %93, %96 : vector<16x64xf32>
    %cst_20 = arith.constant dense<0.000000e+00> : vector<64xf32>
    %98 = vector.multi_reduction <add>, %97, %cst_20 [0] : vector<16x64xf32> to vector<64xf32>
    %99 = vector.shape_cast %98 : vector<64xf32> to vector<1x64xf32>
    %100 = vector.extract_strided_slice %24 {offsets = [2, 0], sizes = [1, 64], strides = [1, 1]} : vector<5x64xf32> to vector<1x64xf32>
    %101 = arith.mulf %43, %100 : vector<1x64xf32>
    %102 = arith.addf %99, %101 : vector<1x64xf32>
    %103 = vector.extract_strided_slice %49 {offsets = [3, 0, 0], sizes = [1, 16, 64], strides = [1, 1, 1]} : vector<5x16x64xf32> to vector<1x16x64xf32>
    %104 = vector.shape_cast %103 : vector<1x16x64xf32> to vector<16x64xf32>
    %105 = arith.mulf %104, %93 : vector<16x64xf32>
    %106 = vector.extract_strided_slice %55 {offsets = [3, 0, 0], sizes = [1, 16, 64], strides = [1, 1, 1]} : vector<5x16x64xf32> to vector<1x16x64xf32>
    %107 = vector.shape_cast %106 : vector<1x16x64xf32> to vector<16x64xf32>
    %108 = arith.addf %105, %107 : vector<16x64xf32>
    %109 = vector.extract_strided_slice %56 {offsets = [3, 0, 0], sizes = [1, 16, 1], strides = [1, 1, 1]} : vector<5x16x1xf32> to vector<1x16x1xf32>
    %110 = vector.shape_cast %109 : vector<1x16x1xf32> to vector<16x1xf32>
    %111 = vector.broadcast %110 : vector<16x1xf32> to vector<16x64xf32>
    %112 = arith.mulf %108, %111 : vector<16x64xf32>
    %cst_21 = arith.constant dense<0.000000e+00> : vector<64xf32>
    %113 = vector.multi_reduction <add>, %112, %cst_21 [0] : vector<16x64xf32> to vector<64xf32>
    %114 = vector.shape_cast %113 : vector<64xf32> to vector<1x64xf32>
    %115 = vector.extract_strided_slice %24 {offsets = [3, 0], sizes = [1, 64], strides = [1, 1]} : vector<5x64xf32> to vector<1x64xf32>
    %116 = arith.mulf %43, %115 : vector<1x64xf32>
    %117 = arith.addf %114, %116 : vector<1x64xf32>
    %118 = vector.extract_strided_slice %49 {offsets = [4, 0, 0], sizes = [1, 16, 64], strides = [1, 1, 1]} : vector<5x16x64xf32> to vector<1x16x64xf32>
    %119 = vector.shape_cast %118 : vector<1x16x64xf32> to vector<16x64xf32>
    %120 = arith.mulf %119, %108 : vector<16x64xf32>
    %121 = vector.extract_strided_slice %55 {offsets = [4, 0, 0], sizes = [1, 16, 64], strides = [1, 1, 1]} : vector<5x16x64xf32> to vector<1x16x64xf32>
    %122 = vector.shape_cast %121 : vector<1x16x64xf32> to vector<16x64xf32>
    %123 = arith.addf %120, %122 : vector<16x64xf32>
    %124 = vector.extract_strided_slice %56 {offsets = [4, 0, 0], sizes = [1, 16, 1], strides = [1, 1, 1]} : vector<5x16x1xf32> to vector<1x16x1xf32>
    %125 = vector.shape_cast %124 : vector<1x16x1xf32> to vector<16x1xf32>
    %126 = vector.broadcast %125 : vector<16x1xf32> to vector<16x64xf32>
    %127 = arith.mulf %123, %126 : vector<16x64xf32>
    %cst_22 = arith.constant dense<0.000000e+00> : vector<64xf32>
    %128 = vector.multi_reduction <add>, %127, %cst_22 [0] : vector<16x64xf32> to vector<64xf32>
    %129 = vector.shape_cast %128 : vector<64xf32> to vector<1x64xf32>
    %130 = vector.extract_strided_slice %24 {offsets = [4, 0], sizes = [1, 64], strides = [1, 1]} : vector<5x64xf32> to vector<1x64xf32>
    %131 = arith.mulf %43, %130 : vector<1x64xf32>
    %132 = arith.addf %129, %131 : vector<1x64xf32>
    %133 = tpu.concatenate %72, %87, %102, %117, %132 in 0 : vector<1x64xf32>, vector<1x64xf32>, vector<1x64xf32>, vector<1x64xf32>, vector<1x64xf32> -> vector<5x64xf32>
    %134 = vector.extract_strided_slice %22 {offsets = [4, 0], sizes = [5, 64], strides = [1, 1]} : vector<9x64xf32> to vector<5x64xf32>
    %c0_23 = arith.constant 0 : index
    %c0_24 = arith.constant 0 : index
    %135 = vector.load %arg8[%c0_23, %c0_24] : memref<65x98xf32, #tpu.memory_space<vmem>>, vector<65x98xf32>
    %136 = vector.extract_strided_slice %135 {offsets = [0, 0], sizes = [64, 98], strides = [1, 1]} : vector<65x98xf32> to vector<64x98xf32>
    %cst_25 = arith.constant dense<0.000000e+00> : vector<5x98xf32>
    %137 = tpu.matmul %134, %136, %cst_25 {dimension_numbers = #tpu.dot_dimension_numbers<[1], [0], [0], [1], [0, 0, 1, 1], [], []>} : vector<5x64xf32>, vector<64x98xf32>, vector<5x98xf32> -> vector<5x98xf32>
    %138 = vector.extract_strided_slice %135 {offsets = [64, 0], sizes = [1, 98], strides = [1, 1]} : vector<65x98xf32> to vector<1x98xf32>
    %139 = vector.broadcast %138 : vector<1x98xf32> to vector<5x98xf32>
    %140 = arith.addf %137, %139 : vector<5x98xf32>
    %141 = vector.extract_strided_slice %140 {offsets = [0, 2], sizes = [5, 16], strides = [1, 1]} : vector<5x98xf32> to vector<5x16xf32>
    %142 = vector.extract_strided_slice %140 {offsets = [0, 18], sizes = [5, 16], strides = [1, 1]} : vector<5x98xf32> to vector<5x16xf32>
    %143 = vector.extract_strided_slice %140 {offsets = [0, 34], sizes = [5, 64], strides = [1, 1]} : vector<5x98xf32> to vector<5x64xf32>
    %cst_26 = arith.constant 2.000000e+01 : f32
    %144 = vector.broadcast %cst_26 : f32 to vector<5x64xf32>
    %145 = arith.cmpf ogt, %143, %144 : vector<5x64xf32>
    %cst_27 = arith.constant 2.000000e+01 : f32
    %146 = vector.broadcast %cst_27 : f32 to vector<5x64xf32>
    %147 = arith.minimumf %143, %146 : vector<5x64xf32>
    %148 = math.exp %147 : vector<5x64xf32>
    %149 = math.log1p %148 : vector<5x64xf32>
    %150 = arith.select %145, %143, %149 : vector<5x64xi1>, vector<5x64xf32>
    %c0_28 = arith.constant 0 : index
    %c0_29 = arith.constant 0 : index
    %151 = vector.load %arg9[%c0_28, %c0_29] : memref<17x64xf32, #tpu.memory_space<vmem>>, vector<17x64xf32>
    %152 = vector.extract_strided_slice %151 {offsets = [0, 0], sizes = [16, 64], strides = [1, 1]} : vector<17x64xf32> to vector<16x64xf32>
    %153 = vector.extract_strided_slice %151 {offsets = [16, 0], sizes = [1, 64], strides = [1, 1]} : vector<17x64xf32> to vector<1x64xf32>
    %154 = vector.shape_cast %150 : vector<5x64xf32> to vector<5x1x64xf32>
    %155 = vector.shape_cast %152 : vector<16x64xf32> to vector<1x16x64xf32>
    %156 = vector.broadcast %154 : vector<5x1x64xf32> to vector<5x16x64xf32>
    %157 = vector.broadcast %155 : vector<1x16x64xf32> to vector<5x16x64xf32>
    %158 = arith.mulf %156, %157 : vector<5x16x64xf32>
    %159 = math.exp %158 : vector<5x16x64xf32>
    %160 = arith.mulf %150, %134 : vector<5x64xf32>
    %161 = vector.shape_cast %160 : vector<5x64xf32> to vector<5x1x64xf32>
    %162 = vector.shape_cast %141 : vector<5x16xf32> to vector<5x16x1xf32>
    %163 = vector.broadcast %161 : vector<5x1x64xf32> to vector<5x16x64xf32>
    %164 = vector.broadcast %162 : vector<5x16x1xf32> to vector<5x16x64xf32>
    %165 = arith.mulf %163, %164 : vector<5x16x64xf32>
    %166 = vector.shape_cast %142 : vector<5x16xf32> to vector<5x16x1xf32>
    %cst_30 = arith.constant 0.000000e+00 : f32
    %167 = vector.broadcast %cst_30 : f32 to vector<16x64xf32>
    %168 = vector.extract_strided_slice %159 {offsets = [4, 0, 0], sizes = [1, 16, 64], strides = [1, 1, 1]} : vector<5x16x64xf32> to vector<1x16x64xf32>
    %169 = vector.shape_cast %168 : vector<1x16x64xf32> to vector<16x64xf32>
    %170 = arith.mulf %169, %167 : vector<16x64xf32>
    %171 = vector.extract_strided_slice %165 {offsets = [4, 0, 0], sizes = [1, 16, 64], strides = [1, 1, 1]} : vector<5x16x64xf32> to vector<1x16x64xf32>
    %172 = vector.shape_cast %171 : vector<1x16x64xf32> to vector<16x64xf32>
    %173 = arith.addf %170, %172 : vector<16x64xf32>
    %174 = vector.extract_strided_slice %166 {offsets = [4, 0, 0], sizes = [1, 16, 1], strides = [1, 1, 1]} : vector<5x16x1xf32> to vector<1x16x1xf32>
    %175 = vector.shape_cast %174 : vector<1x16x1xf32> to vector<16x1xf32>
    %176 = vector.broadcast %175 : vector<16x1xf32> to vector<16x64xf32>
    %177 = arith.mulf %173, %176 : vector<16x64xf32>
    %cst_31 = arith.constant dense<0.000000e+00> : vector<64xf32>
    %178 = vector.multi_reduction <add>, %177, %cst_31 [0] : vector<16x64xf32> to vector<64xf32>
    %179 = vector.shape_cast %178 : vector<64xf32> to vector<1x64xf32>
    %180 = vector.extract_strided_slice %134 {offsets = [4, 0], sizes = [1, 64], strides = [1, 1]} : vector<5x64xf32> to vector<1x64xf32>
    %181 = arith.mulf %153, %180 : vector<1x64xf32>
    %182 = arith.addf %179, %181 : vector<1x64xf32>
    %183 = vector.extract_strided_slice %159 {offsets = [3, 0, 0], sizes = [1, 16, 64], strides = [1, 1, 1]} : vector<5x16x64xf32> to vector<1x16x64xf32>
    %184 = vector.shape_cast %183 : vector<1x16x64xf32> to vector<16x64xf32>
    %185 = arith.mulf %184, %173 : vector<16x64xf32>
    %186 = vector.extract_strided_slice %165 {offsets = [3, 0, 0], sizes = [1, 16, 64], strides = [1, 1, 1]} : vector<5x16x64xf32> to vector<1x16x64xf32>
    %187 = vector.shape_cast %186 : vector<1x16x64xf32> to vector<16x64xf32>
    %188 = arith.addf %185, %187 : vector<16x64xf32>
    %189 = vector.extract_strided_slice %166 {offsets = [3, 0, 0], sizes = [1, 16, 1], strides = [1, 1, 1]} : vector<5x16x1xf32> to vector<1x16x1xf32>
    %190 = vector.shape_cast %189 : vector<1x16x1xf32> to vector<16x1xf32>
    %191 = vector.broadcast %190 : vector<16x1xf32> to vector<16x64xf32>
    %192 = arith.mulf %188, %191 : vector<16x64xf32>
    %cst_32 = arith.constant dense<0.000000e+00> : vector<64xf32>
    %193 = vector.multi_reduction <add>, %192, %cst_32 [0] : vector<16x64xf32> to vector<64xf32>
    %194 = vector.shape_cast %193 : vector<64xf32> to vector<1x64xf32>
    %195 = vector.extract_strided_slice %134 {offsets = [3, 0], sizes = [1, 64], strides = [1, 1]} : vector<5x64xf32> to vector<1x64xf32>
    %196 = arith.mulf %153, %195 : vector<1x64xf32>
    %197 = arith.addf %194, %196 : vector<1x64xf32>
    %198 = vector.extract_strided_slice %159 {offsets = [2, 0, 0], sizes = [1, 16, 64], strides = [1, 1, 1]} : vector<5x16x64xf32> to vector<1x16x64xf32>
    %199 = vector.shape_cast %198 : vector<1x16x64xf32> to vector<16x64xf32>
    %200 = arith.mulf %199, %188 : vector<16x64xf32>
    %201 = vector.extract_strided_slice %165 {offsets = [2, 0, 0], sizes = [1, 16, 64], strides = [1, 1, 1]} : vector<5x16x64xf32> to vector<1x16x64xf32>
    %202 = vector.shape_cast %201 : vector<1x16x64xf32> to vector<16x64xf32>
    %203 = arith.addf %200, %202 : vector<16x64xf32>
    %204 = vector.extract_strided_slice %166 {offsets = [2, 0, 0], sizes = [1, 16, 1], strides = [1, 1, 1]} : vector<5x16x1xf32> to vector<1x16x1xf32>
    %205 = vector.shape_cast %204 : vector<1x16x1xf32> to vector<16x1xf32>
    %206 = vector.broadcast %205 : vector<16x1xf32> to vector<16x64xf32>
    %207 = arith.mulf %203, %206 : vector<16x64xf32>
    %cst_33 = arith.constant dense<0.000000e+00> : vector<64xf32>
    %208 = vector.multi_reduction <add>, %207, %cst_33 [0] : vector<16x64xf32> to vector<64xf32>
    %209 = vector.shape_cast %208 : vector<64xf32> to vector<1x64xf32>
    %210 = vector.extract_strided_slice %134 {offsets = [2, 0], sizes = [1, 64], strides = [1, 1]} : vector<5x64xf32> to vector<1x64xf32>
    %211 = arith.mulf %153, %210 : vector<1x64xf32>
    %212 = arith.addf %209, %211 : vector<1x64xf32>
    %213 = vector.extract_strided_slice %159 {offsets = [1, 0, 0], sizes = [1, 16, 64], strides = [1, 1, 1]} : vector<5x16x64xf32> to vector<1x16x64xf32>
    %214 = vector.shape_cast %213 : vector<1x16x64xf32> to vector<16x64xf32>
    %215 = arith.mulf %214, %203 : vector<16x64xf32>
    %216 = vector.extract_strided_slice %165 {offsets = [1, 0, 0], sizes = [1, 16, 64], strides = [1, 1, 1]} : vector<5x16x64xf32> to vector<1x16x64xf32>
    %217 = vector.shape_cast %216 : vector<1x16x64xf32> to vector<16x64xf32>
    %218 = arith.addf %215, %217 : vector<16x64xf32>
    %219 = vector.extract_strided_slice %166 {offsets = [1, 0, 0], sizes = [1, 16, 1], strides = [1, 1, 1]} : vector<5x16x1xf32> to vector<1x16x1xf32>
    %220 = vector.shape_cast %219 : vector<1x16x1xf32> to vector<16x1xf32>
    %221 = vector.broadcast %220 : vector<16x1xf32> to vector<16x64xf32>
    %222 = arith.mulf %218, %221 : vector<16x64xf32>
    %cst_34 = arith.constant dense<0.000000e+00> : vector<64xf32>
    %223 = vector.multi_reduction <add>, %222, %cst_34 [0] : vector<16x64xf32> to vector<64xf32>
    %224 = vector.shape_cast %223 : vector<64xf32> to vector<1x64xf32>
    %225 = vector.extract_strided_slice %134 {offsets = [1, 0], sizes = [1, 64], strides = [1, 1]} : vector<5x64xf32> to vector<1x64xf32>
    %226 = arith.mulf %153, %225 : vector<1x64xf32>
    %227 = arith.addf %224, %226 : vector<1x64xf32>
    %228 = vector.extract_strided_slice %159 {offsets = [0, 0, 0], sizes = [1, 16, 64], strides = [1, 1, 1]} : vector<5x16x64xf32> to vector<1x16x64xf32>
    %229 = vector.shape_cast %228 : vector<1x16x64xf32> to vector<16x64xf32>
    %230 = arith.mulf %229, %218 : vector<16x64xf32>
    %231 = vector.extract_strided_slice %165 {offsets = [0, 0, 0], sizes = [1, 16, 64], strides = [1, 1, 1]} : vector<5x16x64xf32> to vector<1x16x64xf32>
    %232 = vector.shape_cast %231 : vector<1x16x64xf32> to vector<16x64xf32>
    %233 = arith.addf %230, %232 : vector<16x64xf32>
    %234 = vector.extract_strided_slice %166 {offsets = [0, 0, 0], sizes = [1, 16, 1], strides = [1, 1, 1]} : vector<5x16x1xf32> to vector<1x16x1xf32>
    %235 = vector.shape_cast %234 : vector<1x16x1xf32> to vector<16x1xf32>
    %236 = vector.broadcast %235 : vector<16x1xf32> to vector<16x64xf32>
    %237 = arith.mulf %233, %236 : vector<16x64xf32>
    %cst_35 = arith.constant dense<0.000000e+00> : vector<64xf32>
    %238 = vector.multi_reduction <add>, %237, %cst_35 [0] : vector<16x64xf32> to vector<64xf32>
    %239 = vector.shape_cast %238 : vector<64xf32> to vector<1x64xf32>
    %240 = vector.extract_strided_slice %134 {offsets = [0, 0], sizes = [1, 64], strides = [1, 1]} : vector<5x64xf32> to vector<1x64xf32>
    %241 = arith.mulf %153, %240 : vector<1x64xf32>
    %242 = arith.addf %239, %241 : vector<1x64xf32>
    %243 = tpu.concatenate %182, %197, %212, %227, %242 in 0 : vector<1x64xf32>, vector<1x64xf32>, vector<1x64xf32>, vector<1x64xf32>, vector<1x64xf32> -> vector<5x64xf32>
    %c0_36 = arith.constant 0 : index
    %c0_37 = arith.constant 0 : index
    %244 = vector.load %arg4[%c0_36, %c0_37] : memref<5x1xf32, #tpu.memory_space<vmem>>, vector<5x1xf32>
    %245 = vector.broadcast %244 : vector<5x1xf32> to vector<5x64xf32>
    %246 = arith.mulf %133, %245 : vector<5x64xf32>
    %c0_38 = arith.constant 0 : index
    %c0_39 = arith.constant 0 : index
    %247 = vector.load %arg5[%c0_38, %c0_39] : memref<5x1xf32, #tpu.memory_space<vmem>>, vector<5x1xf32>
    %248 = vector.broadcast %247 : vector<5x1xf32> to vector<5x64xf32>
    %249 = arith.mulf %243, %248 : vector<5x64xf32>
    %250 = tpu.concatenate %246, %249 in 1 : vector<5x64xf32>, vector<5x64xf32> -> vector<5x128xf32>
    %c0_40 = arith.constant 0 : index
    %c0_41 = arith.constant 0 : index
    %251 = vector.load %arg10[%c0_40, %c0_41] : memref<129x64xf32, #tpu.memory_space<vmem>>, vector<129x64xf32>
    %252 = vector.extract_strided_slice %251 {offsets = [0, 0], sizes = [128, 64], strides = [1, 1]} : vector<129x64xf32> to vector<128x64xf32>
    %cst_42 = arith.constant dense<0.000000e+00> : vector<5x64xf32>
    %253 = tpu.matmul %250, %252, %cst_42 {dimension_numbers = #tpu.dot_dimension_numbers<[1], [0], [0], [1], [0, 0, 1, 1], [], []>} : vector<5x128xf32>, vector<128x64xf32>, vector<5x64xf32> -> vector<5x64xf32>
    %254 = vector.extract_strided_slice %251 {offsets = [128, 0], sizes = [1, 64], strides = [1, 1]} : vector<129x64xf32> to vector<1x64xf32>
    %255 = vector.broadcast %254 : vector<1x64xf32> to vector<5x64xf32>
    %256 = arith.addf %253, %255 : vector<5x64xf32>
    %c0_43 = arith.constant 0 : index
    %c0_44 = arith.constant 0 : index
    %257 = vector.load %arg4[%c0_43, %c0_44] : memref<5x1xf32, #tpu.memory_space<vmem>>, vector<5x1xf32>
    %258 = vector.broadcast %257 : vector<5x1xf32> to vector<5x64xf32>
    %259 = arith.mulf %256, %258 : vector<5x64xf32>
    %c0_45 = arith.constant 0 : index
    %c0_46 = arith.constant 0 : index
    %260 = vector.load %arg11[%c0_45, %c0_46] : memref<64x9xf32, #tpu.memory_space<vmem>>, vector<64x9xf32>
    %cst_47 = arith.constant dense<0.000000e+00> : vector<9x5xf32>
    %261 = tpu.matmul %260, %259, %cst_47 {dimension_numbers = #tpu.dot_dimension_numbers<[0], [1], [1], [0], [0, 1, 1, 0], [], []>} : vector<64x9xf32>, vector<5x64xf32>, vector<9x5xf32> -> vector<9x5xf32>
    %cst_48 = arith.constant dense<0xFF800000> : vector<9xf32>
    %262 = vector.multi_reduction <maximumf>, %261, %cst_48 [1] : vector<9x5xf32> to vector<9xf32>
    %263 = vector.shape_cast %262 : vector<9xf32> to vector<9x1xf32>
    %264 = vector.broadcast %263 : vector<9x1xf32> to vector<9x5xf32>
    %265 = arith.subf %261, %264 : vector<9x5xf32>
    %266 = math.exp %265 : vector<9x5xf32>
    %cst_49 = arith.constant dense<0.000000e+00> : vector<9xf32>
    %267 = vector.multi_reduction <add>, %266, %cst_49 [1] : vector<9x5xf32> to vector<9xf32>
    %268 = vector.shape_cast %267 : vector<9xf32> to vector<9x1xf32>
    %269 = vector.broadcast %268 : vector<9x1xf32> to vector<9x5xf32>
    %270 = arith.divf %266, %269 : vector<9x5xf32>
    %c0_50 = arith.constant 0 : index
    %c0_51 = arith.constant 0 : index
    %271 = vector.load %arg12[%c0_50, %c0_51] : memref<64x64xf32, #tpu.memory_space<vmem>>, vector<64x64xf32>
    %cst_52 = arith.constant dense<0.000000e+00> : vector<5x64xf32>
    %272 = tpu.matmul %259, %271, %cst_52 {dimension_numbers = #tpu.dot_dimension_numbers<[1], [0], [0], [1], [0, 0, 1, 1], [], []>} : vector<5x64xf32>, vector<64x64xf32>, vector<5x64xf32> -> vector<5x64xf32>
    %cst_53 = arith.constant dense<0.000000e+00> : vector<9x64xf32>
    %273 = tpu.matmul %270, %272, %cst_53 {dimension_numbers = #tpu.dot_dimension_numbers<[1], [0], [0], [1], [0, 0, 1, 1], [], []>} : vector<9x5xf32>, vector<5x64xf32>, vector<9x64xf32> -> vector<9x64xf32>
    %c0_54 = arith.constant 0 : index
    %c0_55 = arith.constant 0 : index
    %274 = vector.load %arg3[%c0_54, %c0_55] : memref<9x9xf32, #tpu.memory_space<vmem>>, vector<9x9xf32>
    %275 = tpu.concatenate %23, %1 in 1 : vector<9x64xf32>, vector<9x32xf32> -> vector<9x96xf32>
    %cst_56 = arith.constant dense<0.000000e+00> : vector<9x96xf32>
    %276 = tpu.matmul %274, %275, %cst_56 {dimension_numbers = #tpu.dot_dimension_numbers<[1], [0], [0], [1], [0, 0, 1, 1], [], []>} : vector<9x9xf32>, vector<9x96xf32>, vector<9x96xf32> -> vector<9x96xf32>
    %277 = vector.extract_strided_slice %276 {offsets = [0, 0], sizes = [9, 64], strides = [1, 1]} : vector<9x96xf32> to vector<9x64xf32>
    %cst_57 = arith.constant 0.000000e+00 : f32
    %278 = vector.broadcast %cst_57 : f32 to vector<9x64xf32>
    %279 = arith.subf %278, %277 : vector<9x64xf32>
    %280 = math.exp %279 : vector<9x64xf32>
    %cst_58 = arith.constant 1.000000e+00 : f32
    %281 = vector.broadcast %cst_58 : f32 to vector<9x64xf32>
    %282 = arith.addf %281, %280 : vector<9x64xf32>
    %cst_59 = arith.constant 1.000000e+00 : f32
    %283 = vector.broadcast %cst_59 : f32 to vector<9x64xf32>
    %284 = arith.divf %283, %282 : vector<9x64xf32>
    %285 = arith.mulf %277, %284 : vector<9x64xf32>
    %286 = vector.extract_strided_slice %276 {offsets = [0, 64], sizes = [9, 32], strides = [1, 1]} : vector<9x96xf32> to vector<9x32xf32>
    %c0_60 = arith.constant 0 : index
    %c0_61 = arith.constant 0 : index
    %287 = vector.load %arg13[%c0_60, %c0_61] : memref<97x32xf32, #tpu.memory_space<vmem>>, vector<97x32xf32>
    %288 = arith.mulf %273, %285 : vector<9x64xf32>
    %289 = tpu.concatenate %288, %286 in 1 : vector<9x64xf32>, vector<9x32xf32> -> vector<9x96xf32>
    %290 = vector.extract_strided_slice %287 {offsets = [0, 0], sizes = [96, 32], strides = [1, 1]} : vector<97x32xf32> to vector<96x32xf32>
    %cst_62 = arith.constant dense<0.000000e+00> : vector<9x32xf32>
    %291 = tpu.matmul %289, %290, %cst_62 {dimension_numbers = #tpu.dot_dimension_numbers<[1], [0], [0], [1], [0, 0, 1, 1], [], []>} : vector<9x96xf32>, vector<96x32xf32>, vector<9x32xf32> -> vector<9x32xf32>
    %292 = vector.extract_strided_slice %287 {offsets = [96, 0], sizes = [1, 32], strides = [1, 1]} : vector<97x32xf32> to vector<1x32xf32>
    %293 = vector.broadcast %292 : vector<1x32xf32> to vector<9x32xf32>
    %294 = arith.addf %291, %293 : vector<9x32xf32>
    %c0_63 = arith.constant 0 : index
    %c0_64 = arith.constant 0 : index
    %c0_65 = arith.constant 0 : index
    %295 = vector.load %arg14[%c0_63, %c0_64, %c0_65] : memref<1x9x32xf32, #tpu.memory_space<vmem>>, vector<1x9x32xf32>
    %296 = vector.shape_cast %295 : vector<1x9x32xf32> to vector<9x32xf32>
    %297 = vector.shape_cast %294 : vector<9x32xf32> to vector<1x9x32xf32>
    tpu.vector_store %arg14[%c0_63, %c0_64, %c0_65], %297 {strides = array<i32>} : memref<1x9x32xf32, #tpu.memory_space<vmem>>, vector<1x9x32xf32>,
    return
  }
  func.func @transform_0(%arg0: i32) -> (i32, i32, i32) {
    %c0_i32 = arith.constant 0 : i32
    %c0_i32_0 = arith.constant 0 : i32
    %c0_i32_1 = arith.constant 0 : i32
    return %arg0, %c0_i32, %c0_i32_0 : i32, i32, i32
  }
  func.func @transform_1(%arg0: i32) -> (i32, i32) {
    %c0_i32 = arith.constant 0 : i32
    %c0_i32_0 = arith.constant 0 : i32
    %c0_i32_1 = arith.constant 0 : i32
    return %c0_i32, %c0_i32_0 : i32, i32
  }
  func.func @transform_2(%arg0: i32) -> (i32, i32) {
    %c0_i32 = arith.constant 0 : i32
    %c0_i32_0 = arith.constant 0 : i32
    %c0_i32_1 = arith.constant 0 : i32
    return %c0_i32, %c0_i32_0 : i32, i32
  }
  func.func @transform_3(%arg0: i32) -> (i32, i32) {
    %c0_i32 = arith.constant 0 : i32
    %c0_i32_0 = arith.constant 0 : i32
    %c0_i32_1 = arith.constant 0 : i32
    return %c0_i32, %c0_i32_0 : i32, i32
  }
  func.func @transform_4(%arg0: i32) -> (i32, i32) {
    %c0_i32 = arith.constant 0 : i32
    %c0_i32_0 = arith.constant 0 : i32
    %c0_i32_1 = arith.constant 0 : i32
    return %c0_i32, %c0_i32_0 : i32, i32
  }
  func.func @transform_5(%arg0: i32) -> (i32, i32) {
    %c0_i32 = arith.constant 0 : i32
    %c0_i32_0 = arith.constant 0 : i32
    %c0_i32_1 = arith.constant 0 : i32
    return %c0_i32, %c0_i32_0 : i32, i32
  }
  func.func @transform_6(%arg0: i32) -> (i32, i32) {
    %c0_i32 = arith.constant 0 : i32
    %c0_i32_0 = arith.constant 0 : i32
    %c0_i32_1 = arith.constant 0 : i32
    return %c0_i32, %c0_i32_0 : i32, i32
  }
  func.func @transform_7(%arg0: i32) -> (i32, i32) {
    %c0_i32 = arith.constant 0 : i32
    %c0_i32_0 = arith.constant 0 : i32
    %c0_i32_1 = arith.constant 0 : i32
    return %c0_i32, %c0_i32_0 : i32, i32
  }
  func.func @transform_8(%arg0: i32) -> (i32, i32) {
    %c0_i32 = arith.constant 0 : i32
    %c0_i32_0 = arith.constant 0 : i32
    %c0_i32_1 = arith.constant 0 : i32
    return %c0_i32, %c0_i32_0 : i32, i32
  }
  func.func @transform_9(%arg0: i32) -> (i32, i32) {
    %c0_i32 = arith.constant 0 : i32
    %c0_i32_0 = arith.constant 0 : i32
    %c0_i32_1 = arith.constant 0 : i32
    return %c0_i32, %c0_i32_0 : i32, i32
  }
  func.func @transform_10(%arg0: i32) -> (i32, i32) {
    %c0_i32 = arith.constant 0 : i32
    %c0_i32_0 = arith.constant 0 : i32
    %c0_i32_1 = arith.constant 0 : i32
    return %c0_i32, %c0_i32_0 : i32, i32
  }
  func.func @transform_11(%arg0: i32) -> (i32, i32) {
    %c0_i32 = arith.constant 0 : i32
    %c0_i32_0 = arith.constant 0 : i32
    %c0_i32_1 = arith.constant 0 : i32
    return %c0_i32, %c0_i32_0 : i32, i32
  }
  func.func @transform_12(%arg0: i32) -> (i32, i32) {
    %c0_i32 = arith.constant 0 : i32
    %c0_i32_0 = arith.constant 0 : i32
    %c0_i32_1 = arith.constant 0 : i32
    return %c0_i32, %c0_i32_0 : i32, i32
  }
  func.func @transform_13(%arg0: i32) -> (i32, i32, i32) {
    %c0_i32 = arith.constant 0 : i32
    %c0_i32_0 = arith.constant 0 : i32
    %c0_i32_1 = arith.constant 0 : i32
    return %arg0, %c0_i32, %c0_i32_0 : i32, i32, i32
  }
}

</mosaic_0001>

<llo_original>
// kernel: residual_block.1
$region0: #{residual_block.1}
  #allocation0 [shape = 'u32[]', space=smem, size = 0x4, offset = 0x4, fixed_abs, tag = 'smem constant byte address 0x4 - core index']
  #allocation1 [shape = 'u32[144,128]{1,0:T(1,128)}', space=vmem, size = 0x12000, scoped, tag = 'internal scratch']
  %s0 = inlined_call_operand.vmem [shape: f32[2,9,32], index: 0, kind: input, shape index: {}]
  %s1 = inlined_call_operand.vmem [shape: f32[32,128], index: 1, kind: input, shape index: {}]
  %s2 = inlined_call_operand.vmem [shape: f32[9,9], index: 2, kind: input, shape index: {}]
  %s3 = inlined_call_operand.vmem [shape: f32[5,1], index: 3, kind: input, shape index: {}]
  %s4 = inlined_call_operand.vmem [shape: f32[5,1], index: 4, kind: input, shape index: {}]
  %s5 = inlined_call_operand.vmem [shape: f32[65,98], index: 5, kind: input, shape index: {}]
  %s6 = inlined_call_operand.vmem [shape: f32[17,64], index: 6, kind: input, shape index: {}]
  %s7 = inlined_call_operand.vmem [shape: f32[65,98], index: 7, kind: input, shape index: {}]
  %s8 = inlined_call_operand.vmem [shape: f32[17,64], index: 8, kind: input, shape index: {}]
  %s9 = inlined_call_operand.vmem [shape: f32[129,64], index: 9, kind: input, shape index: {}]
  %s10 = inlined_call_operand.vmem [shape: f32[64,9], index: 10, kind: input, shape index: {}]
  %s11 = inlined_call_operand.vmem [shape: f32[64,64], index: 11, kind: input, shape index: {}]
  %s12 = inlined_call_operand.vmem [shape: f32[97,32], index: 12, kind: input, shape index: {}]
  %s13 = inlined_call_operand.vmem [shape: f32[2,9,32], index: 13, kind: output, shape index: {}]
  %s14 = sld [smem:[#allocation0]]
  $region85: #{residual_block.1} parent=0
    _
  %s16 = ssub.s32 1, %s14
  %s17 = scalar_select 0, %s16, %s14
  loop: start=0, step=1, limit=4
  $region2: #{residual_block.1} parent=0 // loop_pre_header
    _
  $region3: #{residual_block.1} parent=0 // loop_header
    %s19 = sphi 0, %s23
    %p20 = scmp.ge.s32.totalorder %s19, 4
    %s29 = sphi 0, %s31
    %s32 = sphi 0, %s29
    %s33 = sphi 0, %s32
    %s49 = sphi 0, %s33
    %s53 = sphi 0, %s53
    %s55 = sphi 0, %s53
    %s56 = sphi 0, %s55
    %s70 = sphi 0, %s56
    %s74 = sphi 0, %s74
    %s76 = sphi 0, %s74
    %s77 = sphi 0, %s76
    %s91 = sphi 0, %s77
    %s95 = sphi 0, %s95
    %s97 = sphi 0, %s95
    %s98 = sphi 0, %s97
    %s112 = sphi 0, %s98
    %s116 = sphi 0, %s116
    %s118 = sphi 0, %s116
    %s119 = sphi 0, %s118
    %s133 = sphi 0, %s119
    %s137 = sphi 0, %s137
    %s139 = sphi 0, %s137
    %s140 = sphi 0, %s139
    %s154 = sphi 0, %s140
    %s158 = sphi 0, %s158
    %s160 = sphi 0, %s158
    %s161 = sphi 0, %s160
    %s175 = sphi 0, %s161
    %s179 = sphi 0, %s179
    %s181 = sphi 0, %s179
    %s182 = sphi 0, %s181
    %s196 = sphi 0, %s182
    %s200 = sphi 0, %s200
    %s202 = sphi 0, %s200
    %s203 = sphi 0, %s202
    %s217 = sphi 0, %s203
    %s221 = sphi 0, %s221
    %s223 = sphi 0, %s221
    %s224 = sphi 0, %s223
    %s238 = sphi 0, %s224
    %s242 = sphi 0, %s242
    %s244 = sphi 0, %s242
    %s245 = sphi 0, %s244
    %s259 = sphi 0, %s245
    %s263 = sphi 0, %s263
    %s265 = sphi 0, %s263
    %s266 = sphi 0, %s265
    %s280 = sphi 0, %s266
    %s284 = sphi 0, %s284
    %s286 = sphi 0, %s284
    %s287 = sphi 0, %s286
    %s301 = sphi 0, %s287
    %s307 = sphi 0, %s309
    %s310 = sphi 0, %s307
    %s311 = sphi 0, %s310
    %s327 = sphi 0, %s311
  $region4: #{residual_block.1} parent=0 // loop_header_branch
    %22 = sbr.rel (%p20) target = $region8
  $region5: #{residual_block.1} parent=0 // loop_body
    %s24 = ssub.s32 %s19, 1
    %s25 = ssub.s32 %s19, 2
    %s26 = sadd.s32 %s19, 1
    %s27 = ssub.s32 %s19, %s26
    %p28 = scmp.eq.s32.totalorder %s27, 0
    %s30 = sadd.s32 %s29, 1
    %s31 = scalar_select %p28, %s29, %s30
    %p34 = pneg %p28
    %p35 = scmp.eq.s32.totalorder %s19, 1
    %p36 = por %p34, %p35
    %p37 = scmp.ne.s32.totalorder %s29, %s32
    %p38 = scmp.eq.s32.totalorder %s19, 0
    %p39 = por %p37, %p38
    %p40 = scmp.ne.s32.totalorder %s29, %s32
    %p41 = scmp.eq.s32.totalorder %s24, 1
    %p42 = por %p40, %p41
    %p43 = scmp.ne.s32.totalorder %s32, %s33
    %p44 = scmp.eq.s32.totalorder %s24, 0
    %p45 = por %p43, %p44
    %p46 = scmp.ne.s32.totalorder %s32, %s33
    %p47 = scmp.eq.s32.totalorder %s25, 1
    %p48 = por %p46, %p47
    %p50 = scmp.ne.s32.totalorder %s33, %s49
    %p51 = scmp.eq.s32.totalorder %s25, 0
    %p52 = por %p50, %p51
    %s54 = sadd.s32 %s53, 1
    %p57 = scmp.eq.s32.totalorder %s19, 1
    %p58 = scmp.ne.s32.totalorder %s53, %s55
    %p59 = scmp.eq.s32.totalorder %s19, 0
    %p60 = por %p58, %p59
    %p61 = scmp.ne.s32.totalorder %s53, %s55
    %p62 = scmp.eq.s32.totalorder %s24, 1
    %p63 = por %p61, %p62
    %p64 = scmp.ne.s32.totalorder %s55, %s56
    %p65 = scmp.eq.s32.totalorder %s24, 0
    %p66 = por %p64, %p65
    %p67 = scmp.ne.s32.totalorder %s55, %s56
    %p68 = scmp.eq.s32.totalorder %s25, 1
    %p69 = por %p67, %p68
    %p71 = scmp.ne.s32.totalorder %s56, %s70
    %p72 = scmp.eq.s32.totalorder %s25, 0
    %p73 = por %p71, %p72
    %s75 = sadd.s32 %s74, 1
    %p78 = scmp.eq.s32.totalorder %s19, 1
    %p79 = scmp.ne.s32.totalorder %s74, %s76
    %p80 = scmp.eq.s32.totalorder %s19, 0
    %p81 = por %p79, %p80
    %p82 = scmp.ne.s32.totalorder %s74, %s76
    %p83 = scmp.eq.s32.totalorder %s24, 1
    %p84 = por %p82, %p83
    %p85 = scmp.ne.s32.totalorder %s76, %s77
    %p86 = scmp.eq.s32.totalorder %s24, 0
    %p87 = por %p85, %p86
    %p88 = scmp.ne.s32.totalorder %s76, %s77
    %p89 = scmp.eq.s32.totalorder %s25, 1
    %p90 = por %p88, %p89
    %p92 = scmp.ne.s32.totalorder %s77, %s91
    %p93 = scmp.eq.s32.totalorder %s25, 0
    %p94 = por %p92, %p93
    %s96 = sadd.s32 %s95, 1
    %p99 = scmp.eq.s32.totalorder %s19, 1
    %p100 = scmp.ne.s32.totalorder %s95, %s97
    %p101 = scmp.eq.s32.totalorder %s19, 0
    %p102 = por %p100, %p101
    %p103 = scmp.ne.s32.totalorder %s95, %s97
    %p104 = scmp.eq.s32.totalorder %s24, 1
    %p105 = por %p103, %p104
    %p106 = scmp.ne.s32.totalorder %s97, %s98
    %p107 = scmp.eq.s32.totalorder %s24, 0
    %p108 = por %p106, %p107
    %p109 = scmp.ne.s32.totalorder %s97, %s98
    %p110 = scmp.eq.s32.totalorder %s25, 1
    %p111 = por %p109, %p110
    %p113 = scmp.ne.s32.totalorder %s98, %s112
    %p114 = scmp.eq.s32.totalorder %s25, 0
    %p115 = por %p113, %p114
    %s117 = sadd.s32 %s116, 1
    %p120 = scmp.eq.s32.totalorder %s19, 1
    %p121 = scmp.ne.s32.totalorder %s116, %s118
    %p122 = scmp.eq.s32.totalorder %s19, 0
    %p123 = por %p121, %p122
    %p124 = scmp.ne.s32.totalorder %s116, %s118
    %p125 = scmp.eq.s32.totalorder %s24, 1
    %p126 = por %p124, %p125
    %p127 = scmp.ne.s32.totalorder %s118, %s119
    %p128 = scmp.eq.s32.totalorder %s24, 0
    %p129 = por %p127, %p128
    %p130 = scmp.ne.s32.totalorder %s118, %s119
    %p131 = scmp.eq.s32.totalorder %s25, 1
    %p132 = por %p130, %p131
    %p134 = scmp.ne.s32.totalorder %s119, %s133
    %p135 = scmp.eq.s32.totalorder %s25, 0
    %p136 = por %p134, %p135
    %s138 = sadd.s32 %s137, 1
    %p141 = scmp.eq.s32.totalorder %s19, 1
    %p142 = scmp.ne.s32.totalorder %s137, %s139
    %p143 = scmp.eq.s32.totalorder %s19, 0
    %p144 = por %p142, %p143
    %p145 = scmp.ne.s32.totalorder %s137, %s139
    %p146 = scmp.eq.s32.totalorder %s24, 1
    %p147 = por %p145, %p146
    %p148 = scmp.ne.s32.totalorder %s139, %s140
    %p149 = scmp.eq.s32.totalorder %s24, 0
    %p150 = por %p148, %p149
    %p151 = scmp.ne.s32.totalorder %s139, %s140
    %p152 = scmp.eq.s32.totalorder %s25, 1
    %p153 = por %p151, %p152
    %p155 = scmp.ne.s32.totalorder %s140, %s154
    %p156 = scmp.eq.s32.totalorder %s25, 0
    %p157 = por %p155, %p156
    %s159 = sadd.s32 %s158, 1
    %p162 = scmp.eq.s32.totalorder %s19, 1
    %p163 = scmp.ne.s32.totalorder %s158, %s160
    %p164 = scmp.eq.s32.totalorder %s19, 0
    %p165 = por %p163, %p164
    %p166 = scmp.ne.s32.totalorder %s158, %s160
    %p167 = scmp.eq.s32.totalorder %s24, 1
    %p168 = por %p166, %p167
    %p169 = scmp.ne.s32.totalorder %s160, %s161
    %p170 = scmp.eq.s32.totalorder %s24, 0
    %p171 = por %p169, %p170
    %p172 = scmp.ne.s32.totalorder %s160, %s161
    %p173 = scmp.eq.s32.totalorder %s25, 1
    %p174 = por %p172, %p173
    %p176 = scmp.ne.s32.totalorder %s161, %s175
    %p177 = scmp.eq.s32.totalorder %s25, 0
    %p178 = por %p176, %p177
    %s180 = sadd.s32 %s179, 1
    %p183 = scmp.eq.s32.totalorder %s19, 1
    %p184 = scmp.ne.s32.totalorder %s179, %s181
    %p185 = scmp.eq.s32.totalorder %s19, 0
    %p186 = por %p184, %p185
    %p187 = scmp.ne.s32.totalorder %s179, %s181
    %p188 = scmp.eq.s32.totalorder %s24, 1
    %p189 = por %p187, %p188
    %p190 = scmp.ne.s32.totalorder %s181, %s182
    %p191 = scmp.eq.s32.totalorder %s24, 0
    %p192 = por %p190, %p191
    %p193 = scmp.ne.s32.totalorder %s181, %s182
    %p194 = scmp.eq.s32.totalorder %s25, 1
    %p195 = por %p193, %p194
    %p197 = scmp.ne.s32.totalorder %s182, %s196
    %p198 = scmp.eq.s32.totalorder %s25, 0
    %p199 = por %p197, %p198
    %s201 = sadd.s32 %s200, 1
    %p204 = scmp.eq.s32.totalorder %s19, 1
    %p205 = scmp.ne.s32.totalorder %s200, %s202
    %p206 = scmp.eq.s32.totalorder %s19, 0
    %p207 = por %p205, %p206
    %p208 = scmp.ne.s32.totalorder %s200, %s202
    %p209 = scmp.eq.s32.totalorder %s24, 1
    %p210 = por %p208, %p209
    %p211 = scmp.ne.s32.totalorder %s202, %s203
    %p212 = scmp.eq.s32.totalorder %s24, 0
    %p213 = por %p211, %p212
    %p214 = scmp.ne.s32.totalorder %s202, %s203
    %p215 = scmp.eq.s32.totalorder %s25, 1
    %p216 = por %p214, %p215
    %p218 = scmp.ne.s32.totalorder %s203, %s217
    %p219 = scmp.eq.s32.totalorder %s25, 0
    %p220 = por %p218, %p219
    %s222 = sadd.s32 %s221, 1
    %p225 = scmp.eq.s32.totalorder %s19, 1
    %p226 = scmp.ne.s32.totalorder %s221, %s223
    %p227 = scmp.eq.s32.totalorder %s19, 0
    %p228 = por %p226, %p227
    %p229 = scmp.ne.s32.totalorder %s221, %s223
    %p230 = scmp.eq.s32.totalorder %s24, 1
    %p231 = por %p229, %p230
    %p232 = scmp.ne.s32.totalorder %s223, %s224
    %p233 = scmp.eq.s32.totalorder %s24, 0
    %p234 = por %p232, %p233
    %p235 = scmp.ne.s32.totalorder %s223, %s224
    %p236 = scmp.eq.s32.totalorder %s25, 1
    %p237 = por %p235, %p236
    %p239 = scmp.ne.s32.totalorder %s224, %s238
    %p240 = scmp.eq.s32.totalorder %s25, 0
    %p241 = por %p239, %p240
    %s243 = sadd.s32 %s242, 1
    %p246 = scmp.eq.s32.totalorder %s19, 1
    %p247 = scmp.ne.s32.totalorder %s242, %s244
    %p248 = scmp.eq.s32.totalorder %s19, 0
    %p249 = por %p247, %p248
    %p250 = scmp.ne.s32.totalorder %s242, %s244
    %p251 = scmp.eq.s32.totalorder %s24, 1
    %p252 = por %p250, %p251
    %p253 = scmp.ne.s32.totalorder %s244, %s245
    %p254 = scmp.eq.s32.totalorder %s24, 0
    %p255 = por %p253, %p254
    %p256 = scmp.ne.s32.totalorder %s244, %s245
    %p257 = scmp.eq.s32.totalorder %s25, 1
    %p258 = por %p256, %p257
    %p260 = scmp.ne.s32.totalorder %s245, %s259
    %p261 = scmp.eq.s32.totalorder %s25, 0
    %p262 = por %p260, %p261
    %s264 = sadd.s32 %s263, 1
    %p267 = scmp.eq.s32.totalorder %s19, 1
    %p268 = scmp.ne.s32.totalorder %s263, %s265
    %p269 = scmp.eq.s32.totalorder %s19, 0
    %p270 = por %p268, %p269
    %p271 = scmp.ne.s32.totalorder %s263, %s265
    %p272 = scmp.eq.s32.totalorder %s24, 1
    %p273 = por %p271, %p272
    %p274 = scmp.ne.s32.totalorder %s265, %s266
    %p275 = scmp.eq.s32.totalorder %s24, 0
    %p276 = por %p274, %p275
    %p277 = scmp.ne.s32.totalorder %s265, %s266
    %p278 = scmp.eq.s32.totalorder %s25, 1
    %p279 = por %p277, %p278
    %p281 = scmp.ne.s32.totalorder %s266, %s280
    %p282 = scmp.eq.s32.totalorder %s25, 0
    %p283 = por %p281, %p282
    %s285 = sadd.s32 %s284, 1
    %p288 = scmp.eq.s32.totalorder %s19, 1
    %p289 = scmp.ne.s32.totalorder %s284, %s286
    %p290 = scmp.eq.s32.totalorder %s19, 0
    %p291 = por %p289, %p290
    %p292 = scmp.ne.s32.totalorder %s284, %s286
    %p293 = scmp.eq.s32.totalorder %s24, 1
    %p294 = por %p292, %p293
    %p295 = scmp.ne.s32.totalorder %s286, %s287
    %p296 = scmp.eq.s32.totalorder %s24, 0
    %p297 = por %p295, %p296
    %p298 = scmp.ne.s32.totalorder %s286, %s287
    %p299 = scmp.eq.s32.totalorder %s25, 1
    %p300 = por %p298, %p299
    %p302 = scmp.ne.s32.totalorder %s287, %s301
    %p303 = scmp.eq.s32.totalorder %s25, 0
    %p304 = por %p302, %p303
    %s305 = ssub.s32 %s19, %s26
    %p306 = scmp.eq.s32.totalorder %s305, 0
    %s308 = sadd.s32 %s307, 1
    %s309 = scalar_select %p306, %s307, %s308
    %p312 = pneg %p306
    %p313 = scmp.eq.s32.totalorder %s19, 1
    %p314 = por %p312, %p313
    %p315 = scmp.ne.s32.totalorder %s307, %s310
    %p316 = scmp.eq.s32.totalorder %s19, 0
    %p317 = por %p315, %p316
    %p318 = scmp.ne.s32.totalorder %s307, %s310
    %p319 = scmp.eq.s32.totalorder %s24, 1
    %p320 = por %p318, %p319
    %p321 = scmp.ne.s32.totalorder %s310, %s311
    %p322 = scmp.eq.s32.totalorder %s24, 0
    %p323 = por %p321, %p322
    %p324 = scmp.ne.s32.totalorder %s310, %s311
    %p325 = scmp.eq.s32.totalorder %s25, 1
    %p326 = por %p324, %p325
    %p328 = scmp.ne.s32.totalorder %s311, %s327
    %p329 = scmp.eq.s32.totalorder %s25, 0
    %p330 = por %p328, %p329
    %p331 = scmp.le.s32.totalorder 1, %s19
    %p332 = scmp.lt.s32.totalorder %s19, 3
    %p333 = pnand %p331, %p332
    %p334 = pneg %p333
    // Predicated region
    $region9: #{residual_block.1} parent=5 // pred_check
      _
    $region10: #{residual_block.1} parent=5 // pred_check_branch
      %336 = sbr.rel (%p333) target = $region12
    $region11: #{residual_block.1} parent=5 // pred_region
      %s337 = ssub.s32 %s19, 1
      // Predicated region
      $region13: #{residual_block.1} parent=11 // pred_check
        %p338 = pneg %p66
      $region14: #{residual_block.1} parent=11 // pred_check_branch
        %340 = sbr.rel (%p338) target = $region16
      $region15: #{residual_block.1} parent=11 // pred_region
        _
      $region16: #{residual_block.1} parent=11 // pred_fallthru
        _
      // Predicated region
      $region17: #{residual_block.1} parent=11 // pred_check
        %p341 = pneg %p87
      $region18: #{residual_block.1} parent=11 // pred_check_branch
        %343 = sbr.rel (%p341) target = $region20
      $region19: #{residual_block.1} parent=11 // pred_region
        _
      $region20: #{residual_block.1} parent=11 // pred_fallthru
        _
      // Predicated region
      $region21: #{residual_block.1} parent=11 // pred_check
        %p344 = pneg %p108
      $region22: #{residual_block.1} parent=11 // pred_check_branch
        %346 = sbr.rel (%p344) target = $region24
      $region23: #{residual_block.1} parent=11 // pred_region
        _
      $region24: #{residual_block.1} parent=11 // pred_fallthru
        _
      // Predicated region
      $region25: #{residual_block.1} parent=11 // pred_check
        %p347 = pneg %p129
      $region26: #{residual_block.1} parent=11 // pred_check_branch
        %349 = sbr.rel (%p347) target = $region28
      $region27: #{residual_block.1} parent=11 // pred_region
        _
      $region28: #{residual_block.1} parent=11 // pred_fallthru
        _
      // Predicated region
      $region29: #{residual_block.1} parent=11 // pred_check
        %p350 = pneg %p150
      $region30: #{residual_block.1} parent=11 // pred_check_branch
        %352 = sbr.rel (%p350) target = $region32
      $region31: #{residual_block.1} parent=11 // pred_region
        _
      $region32: #{residual_block.1} parent=11 // pred_fallthru
        _
      // Predicated region
      $region33: #{residual_block.1} parent=11 // pred_check
        %p353 = pneg %p171
      $region34: #{residual_block.1} parent=11 // pred_check_branch
        %355 = sbr.rel (%p353) target = $region36
      $region35: #{residual_block.1} parent=11 // pred_region
        _
      $region36: #{residual_block.1} parent=11 // pred_fallthru
        _
      // Predicated region
      $region37: #{residual_block.1} parent=11 // pred_check
        %p356 = pneg %p192
      $region38: #{residual_block.1} parent=11 // pred_check_branch
        %358 = sbr.rel (%p356) target = $region40
      $region39: #{residual_block.1} parent=11 // pred_region
        _
      $region40: #{residual_block.1} parent=11 // pred_fallthru
        _
      // Predicated region
      $region41: #{residual_block.1} parent=11 // pred_check
        %p359 = pneg %p213
      $region42: #{residual_block.1} parent=11 // pred_check_branch
        %361 = sbr.rel (%p359) target = $region44
      $region43: #{residual_block.1} parent=11 // pred_region
        _
      $region44: #{residual_block.1} parent=11 // pred_fallthru
        _
      // Predicated region
      $region45: #{residual_block.1} parent=11 // pred_check
        %p362 = pneg %p234
      $region46: #{residual_block.1} parent=11 // pred_check_branch
        %364 = sbr.rel (%p362) target = $region48
      $region47: #{residual_block.1} parent=11 // pred_region
        _
      $region48: #{residual_block.1} parent=11 // pred_fallthru
        _
      // Predicated region
      $region49: #{residual_block.1} parent=11 // pred_check
        %p365 = pneg %p255
      $region50: #{residual_block.1} parent=11 // pred_check_branch
        %367 = sbr.rel (%p365) target = $region52
      $region51: #{residual_block.1} parent=11 // pred_region
        _
      $region52: #{residual_block.1} parent=11 // pred_fallthru
        _
      // Predicated region
      $region53: #{residual_block.1} parent=11 // pred_check
        %p368 = pneg %p276
      $region54: #{residual_block.1} parent=11 // pred_check_branch
        %370 = sbr.rel (%p368) target = $region56
      $region55: #{residual_block.1} parent=11 // pred_region
        _
      $region56: #{residual_block.1} parent=11 // pred_fallthru
        _
      // Predicated region
      $region57: #{residual_block.1} parent=11 // pred_check
        %p371 = pneg %p297
      $region58: #{residual_block.1} parent=11 // pred_check_branch
        %373 = sbr.rel (%p371) target = $region60
      $region59: #{residual_block.1} parent=11 // pred_region
        _
      $region60: #{residual_block.1} parent=11 // pred_fallthru
        _
    $region12: #{residual_block.1} parent=5 // pred_fallthru
      _
    %p374 = scmp.lt.s32.totalorder %s19, 2
    // Predicated region
    $region61: #{residual_block.1} parent=5 // pred_check
      %p375 = pneg %p374
    $region62: #{residual_block.1} parent=5 // pred_check_branch
      %377 = sbr.rel (%p375) target = $region64
    $region63: #{residual_block.1} parent=5 // pred_region
      // Predicated region
      $region65: #{residual_block.1} parent=63 // pred_check
        %p378 = pneg %p39
      $region66: #{residual_block.1} parent=63 // pred_check_branch
        %380 = sbr.rel (%p378) target = $region68
      $region67: #{residual_block.1} parent=63 // pred_region
        %p381 = scmp.lt.s32.totalorder %s19, 1
        %s382 = scalar_select %p381, %s19, 1
        %s383 = smul.addr %s382, 2
        %s384 = smul.addr %s383, 8
        %s385 = scalar_lea.vmem %s0, %s384
      $region68: #{residual_block.1} parent=63 // pred_fallthru
        _
    $region64: #{residual_block.1} parent=5 // pred_fallthru
      _
    %p386 = scmp.le.s32.totalorder 1, %s19
    %p387 = scmp.lt.s32.totalorder %s19, 3
    %p388 = pnand %p386, %p387
    %p389 = pneg %p388
    // Predicated region
    $region69: #{residual_block.1} parent=5 // pred_check
      _
    $region70: #{residual_block.1} parent=5 // pred_check_branch
      %391 = sbr.rel (%p388) target = $region72
    $region71: #{residual_block.1} parent=5 // pred_region
      %s392 = ssub.s32 %s19, 1
      %p393 = scmp.lt.s32.totalorder %s24, 1
      %s394 = scalar_select %p393, %s24, 1
      %s395 = smul.addr %s394, 2
      %s396 = smul.addr %s395, 8
      %s397 = scalar_lea.vmem %s0, %s396
      %p398 = pneg %p45
      %p399 = pneg %p42
      %p400 = pneg %p66
      %p401 = pneg %p63
      %p402 = pneg %p87
      %p403 = pneg %p84
      %p404 = pneg %p108
      %p405 = pneg %p105
      %p406 = pneg %p129
      %p407 = pneg %p126
      %p408 = pneg %p150
      %p409 = pneg %p147
      %p410 = pneg %p171
      %p411 = pneg %p168
      %p412 = pneg %p192
      %p413 = pneg %p189
      %p414 = pneg %p213
      %p415 = pneg %p210
      %p416 = pneg %p234
      %p417 = pneg %p231
      %p418 = pneg %p255
      %p419 = pneg %p252
      %p420 = pneg %p276
      %p421 = pneg %p273
      %p422 = pneg %p297
      %p423 = pneg %p294
      %p424 = pneg %p323
      %p425 = pneg %p320
      %p426 = scmp.lt.s32.totalorder %s24, 1
      %s427 = scalar_select %p426, %s24, 1
      %s428 = smul.addr %s427, 2
      %s429 = smul.addr %s428, 8
      %s430 = scalar_lea.vmem %s13, %s429
      %p431 = scmp.lt.s32.totalorder %s24, 1
      %s432 = scalar_select %p431, %s24, 1
      %s433 = smul.addr %s432, 2
      %s434 = smul.addr %s433, 8
      %s435 = scalar_lea.vmem %s0, %s434
      %p436 = scmp.lt.s32.totalorder %s24, 1
      %s437 = scalar_select %p436, %s24, 1
      %s438 = smul.addr %s437, 2
      %s439 = smul.addr %s438, 8
      %s440 = scalar_lea.vmem %s13, %s439
      %v441 = vld [vmem:[%s435] sm:$0xff]
      %v442 = vld [vmem:[%s435 + $0x8] sm:$0x1]
      %v443 = vmul.f32 %v441, %v441
      %v444 = vmul.f32 %v442, %v442
      %vm445 = vcmask 261120
      %v446 = vsel %vm445, %v443, 0.0
      %447 = vadd.xlane.f32.xlu0 %v446
      %v448 = vpop.xlane.xlu0 %447
      %vm449 = vcmask 253952
      %v450 = vsel %vm449, %v444, 0.0
      %451 = vadd.xlane.f32.xlu0 %v450
      %v452 = vpop.xlane.xlu0 %451
      %v453 = vrcp.pop 32.0
      %v454 = vmul.f32 %v448, %v453
      %v455 = vmul.f32 %v452, %v453
      %v456 = vadd.f32 %v454, 1e-05
      %v457 = vadd.f32 %v455, 1e-05
      %v458 = vrsqrt.pop %v456
      %v459 = vrsqrt.pop %v457
      %v460 = vmul.f32 %v441, %v458
      %v461 = vmul.f32 %v442, %v459
      %v462 = vld [vmem:[%s1] sm:$0xff]
      %v463 = vld [vmem:[%s1 + $0x8] sm:$0xff]
      %v464 = vld [vmem:[%s1 + $0x10] sm:$0xff]
      %v465 = vld [vmem:[%s1 + $0x18] sm:$0xff]
      %v467 = vsel %vm445, %v460, 0
      %v470 = vsel %vm445, %v461, 0
      %472 = vmatprep.subr.mxu0 0.0
      %473 = vmatpush1.msra.mxu0 0.0
      %474 = vmatprep.subr.mxu0 0.0
      %475 = vmatpush1.msra.mxu0 0.0
      %476 = vmatprep.subr.mxu0 0.0
      %477 = vmatpush1.msra.mxu0 0.0
      %478 = vmatprep.subr.mxu0 0.0
      %479 = vmatpush1.msra.mxu0 0.0
      %480 = vmatprep.subr.mxu0 0.0
      %481 = vmatpush1.msra.mxu0 0.0
      %482 = vmatprep.subr.mxu0 0.0
      %483 = vmatpush1.msra.mxu0 0.0
      %484 = vmatprep.subr.mxu0 0.0
      %485 = vmatpush1.msra.mxu0 0.0
      %486 = vmatprep.subr.mxu0 0.0
      %487 = vmatpush1.msra.mxu0 0.0
      %488 = vmatprep.subr.mxu0 0.0
      %489 = vmatpush1.msra.mxu0 0.0
      %490 = vmatprep.subr.mxu0 0.0
      %491 = vmatpush1.msra.mxu0 0.0
      %492 = vmatprep.subr.mxu0 0.0
      %493 = vmatpush1.msra.mxu0 0.0
      %494 = vmatprep.subr.mxu0 0.0
      %495 = vmatpush1.msra.mxu0 0.0
      %496 = vmatprep.subr.mxu0 0.0
      %497 = vmatpush1.msra.mxu0 %v465
      %498 = vmatprep.subr.mxu0 0.0
      %499 = vmatpush1.msra.mxu0 %v464
      %500 = vmatprep.subr.mxu0 0.0
      %501 = vmatpush1.msra.mxu0 %v463
      %502 = vmatprep.subr.mxu0 0.0
      %503 = vmatpush1.msra.mxu0 %v462
      %504 = vmatprep.subr.mxu0 0.0
      %505 = vmatpush2.msra.mxu0 0.0
      %506 = vmatprep.subr.mxu0 0.0
      %507 = vmatpush2.msra.mxu0 0.0
      %508 = vmatprep.subr.mxu0 0.0
      %509 = vmatpush2.msra.mxu0 0.0
      %510 = vmatprep.subr.mxu0 0.0
      %511 = vmatpush2.msra.mxu0 0.0
      %512 = vmatprep.subr.mxu0 0.0
      %513 = vmatpush2.msra.mxu0 0.0
      %514 = vmatprep.subr.mxu0 0.0
      %515 = vmatpush2.msra.mxu0 0.0
      %516 = vmatprep.subr.mxu0 0.0
      %517 = vmatpush2.msra.mxu0 0.0
      %518 = vmatprep.subr.mxu0 0.0
      %519 = vmatpush2.msra.mxu0 0.0
      %520 = vmatprep.subr.mxu0 0.0
      %521 = vmatpush2.msra.mxu0 0.0
      %522 = vmatprep.subr.mxu0 0.0
      %523 = vmatpush2.msra.mxu0 0.0
      %524 = vmatprep.subr.mxu0 0.0
      %525 = vmatpush2.msra.mxu0 0.0
      %526 = vmatprep.subr.mxu0 0.0
      %527 = vmatpush2.msra.mxu0 0.0
      %528 = vmatprep.subr.mxu0 0.0
      %529 = vmatpush2.msra.mxu0 0.0
      %530 = vmatprep.subr.mxu0 0.0
      %531 = vmatpush2.msra.mxu0 0.0
      %532 = vmatprep.subr.mxu0 0.0
      %533 = vmatpush2.msra.mxu0 0.0
      %534 = vmatprep.subr.mxu0 0.0
      %535 = vmatpush2.msra.mxu0 0.0
      %536 = vmatprep.mubr.f32.mxu0 0.0
      %537 = vmatmul.mubr.f32.gmra.mxu0 %v467
      %v538 = vpop.f32.mrf.mxu0
      %v539 = vadd.f32 0.0, %v538
      %v540 = vpop.f32.mrf.mxu0
      %541 = vmatprep.mubr.f32.mxu0 0.0
      %542 = vmatmul.mubr.f32.gmra.mxu0 %v470
      %v543 = vpop.f32.mrf.mxu0
      %v544 = vadd.f32 0.0, %v543
      %v545 = vpop.f32.mrf.mxu0
      %546 = vdwg.mxu0
      %v547 = vsub.f32 0.0, %v539
      %v548 = vsub.f32 0.0, %v544
      %v549 = vmul.f32 %v547, 1.442695
      %v550 = vpow.pop %v549
      %v551 = vmul.f32 %v548, 1.442695
      %v552 = vpow.pop %v551
      %v553 = vadd.f32 %v550, 1.0
      %v554 = vadd.f32 %v552, 1.0
      %v555 = vrcp.pop %v553
      %v556 = vmul.f32 1.0, %v555
      %v557 = vrcp.pop %v554
      %v558 = vmul.f32 1.0, %v557
      %v559 = vmul.f32 %v539, %v556
      %v560 = vmul.f32 %v544, %v558
      %v561 = vld [vmem:[%s5] sm:$0xff]
      %v562 = vld [vmem:[%s5 + $0x8] sm:$0xff]
      %v563 = vld [vmem:[%s5 + $0x10] sm:$0xff]
      %v564 = vld [vmem:[%s5 + $0x18] sm:$0xff]
      %v565 = vld [vmem:[%s5 + $0x20] sm:$0xff]
      %v566 = vld [vmem:[%s5 + $0x28] sm:$0xff]
      %v567 = vld [vmem:[%s5 + $0x30] sm:$0xff]
      %v568 = vld [vmem:[%s5 + $0x38] sm:$0xff]
      %v569 = vld [vmem:[%s5 + $0x40] sm:$0x1]
      %v570 = vlaneseq
      %v571 = vshrl.u32 %v570, 7
      %v572 = vsub.s32 0, %v571
      %v573 = vrot.slane %v569, %v572
      %vm574 = vcmask 523264
      %v576 = vsel %vm574, %v559, 0
      %578 = vmatprep.subr.mxu0 0.0
      %579 = vmatpush1.msra.mxu0 0.0
      %580 = vmatprep.subr.mxu0 0.0
      %581 = vmatpush1.msra.mxu0 0.0
      %582 = vmatprep.subr.mxu0 0.0
      %583 = vmatpush1.msra.mxu0 0.0
      %584 = vmatprep.subr.mxu0 0.0
      %585 = vmatpush1.msra.mxu0 0.0
      %586 = vmatprep.subr.mxu0 0.0
      %587 = vmatpush1.msra.mxu0 0.0
      %588 = vmatprep.subr.mxu0 0.0
      %589 = vmatpush1.msra.mxu0 0.0
      %590 = vmatprep.subr.mxu0 0.0
      %591 = vmatpush1.msra.mxu0 0.0
      %592 = vmatprep.subr.mxu0 0.0
      %593 = vmatpush1.msra.mxu0 0.0
      %594 = vmatprep.subr.mxu0 0.0
      %595 = vmatpush1.msra.mxu0 %v568
      %596 = vmatprep.subr.mxu0 0.0
      %597 = vmatpush1.msra.mxu0 %v567
      %598 = vmatprep.subr.mxu0 0.0
      %599 = vmatpush1.msra.mxu0 %v566
      %600 = vmatprep.subr.mxu0 0.0
      %601 = vmatpush1.msra.mxu0 %v565
      %602 = vmatprep.subr.mxu0 0.0
      %603 = vmatpush1.msra.mxu0 %v564
      %604 = vmatprep.subr.mxu0 0.0
      %605 = vmatpush1.msra.mxu0 %v563
      %606 = vmatprep.subr.mxu0 0.0
      %607 = vmatpush1.msra.mxu0 %v562
      %608 = vmatprep.subr.mxu0 0.0
      %609 = vmatpush1.msra.mxu0 %v561
      %610 = vmatprep.subr.mxu0 0.0
      %611 = vmatpush2.msra.mxu0 0.0
      %612 = vmatprep.subr.mxu0 0.0
      %613 = vmatpush2.msra.mxu0 0.0
      %614 = vmatprep.subr.mxu0 0.0
      %615 = vmatpush2.msra.mxu0 0.0
      %616 = vmatprep.subr.mxu0 0.0
      %617 = vmatpush2.msra.mxu0 0.0
      %618 = vmatprep.subr.mxu0 0.0
      %619 = vmatpush2.msra.mxu0 0.0
      %620 = vmatprep.subr.mxu0 0.0
      %621 = vmatpush2.msra.mxu0 0.0
      %622 = vmatprep.subr.mxu0 0.0
      %623 = vmatpush2.msra.mxu0 0.0
      %624 = vmatprep.subr.mxu0 0.0
      %625 = vmatpush2.msra.mxu0 0.0
      %626 = vmatprep.subr.mxu0 0.0
      %627 = vmatpush2.msra.mxu0 0.0
      %628 = vmatprep.subr.mxu0 0.0
      %629 = vmatpush2.msra.mxu0 0.0
      %630 = vmatprep.subr.mxu0 0.0
      %631 = vmatpush2.msra.mxu0 0.0
      %632 = vmatprep.subr.mxu0 0.0
      %633 = vmatpush2.msra.mxu0 0.0
      %634 = vmatprep.subr.mxu0 0.0
      %635 = vmatpush2.msra.mxu0 0.0
      %636 = vmatprep.subr.mxu0 0.0
      %637 = vmatpush2.msra.mxu0 0.0
      %638 = vmatprep.subr.mxu0 0.0
      %639 = vmatpush2.msra.mxu0 0.0
      %640 = vmatprep.subr.mxu0 0.0
      %641 = vmatpush2.msra.mxu0 0.0
      %642 = vmatprep.mubr.f32.mxu0 0.0
      %643 = vmatmul.mubr.f32.gmra.mxu0 %v576
      %v644 = vpop.f32.mrf.mxu0
      %v645 = vadd.f32 %v573, %v644
      %v646 = vpop.f32.mrf.mxu0
      %647 = vdwg.mxu0
      %vm648 = vcmp.gt.f32.partialorder %v645, 20.0
      %v649 = vmin.f32 %v645, 20.0
      %v650 = vmul.f32 %v649, 1.442695
      %v651 = vpow.pop %v650
      %v652 = vadd.f32 %v651, 1.0
      %v653 = vlog2.pop %v652
      %v654 = vmul.f32 %v653, 0.6931472
      %v655 = vmul.f32 -0.5, %v651
      %v656 = vadd.f32 %v655, 1.0
      %v657 = vmul.f32 %v656, %v651
      %v658 = vand.u32 2147483647, %v651
      %vm659 = vcmp.lt.f32.partialorder %v658, 0.0004427343
      %v660 = vsel %vm659, %v657, %v654
      %v661 = vsel %vm648, %v645, %v660
      %v662 = vld [vmem:[%s6] sm:$0xff]
      %v663 = vld [vmem:[%s6 + $0x8] sm:$0xff]
      %v664 = vld [vmem:[%s6 + $0x10] sm:$0x1]
      %v666 = vcombine.high %v661, %v661
      %v668 = vunpack.c.l.s4 1966171168
      %v669 = vunpack.c.0.s8 %v668
      %v670 = vlaneseq
      %v671 = vshrl.u32 %v670, 7
      %v672 = vsub.s32 %v669, %v671
      %v673 = vrot.slane %v661, %v672
      %v675 = vunpack.c.l.s4 1966171168
      %v676 = vunpack.c.0.s8 %v675
      %v677 = vlaneseq
      %v678 = vshrl.u32 %v677, 7
      %v679 = vsub.s32 %v676, %v678
      %v680 = vrot.slane %v666, %v679
      %v681 = vcombine.high %v673, %v673
      %v683 = vunpack.c.l.s4 1966171168
      %v684 = vunpack.c.0.s8 %v683
      %v685 = vlaneseq
      %v686 = vshrl.u32 %v685, 7
      %v687 = vsub.s32 %v684, %v686
      %v688 = vrot.slane %v673, %v687
      %v690 = vunpack.c.l.s4 1966171168
      %v691 = vunpack.c.0.s8 %v690
      %v692 = vlaneseq
      %v693 = vshrl.u32 %v692, 7
      %v694 = vsub.s32 %v691, %v693
      %v695 = vrot.slane %v680, %v694
      %v697 = vunpack.c.l.s4 1966171168
      %v698 = vunpack.c.0.s8 %v697
      %v699 = vlaneseq
      %v700 = vshrl.u32 %v699, 7
      %v701 = vsub.s32 %v698, %v700
      %v702 = vrot.slane %v681, %v701
      %v703 = vcombine.high %v688, %v688
      %v704 = vcombine.high %v702, %v702
      %v705 = vlaneseq
      %v706 = vshrl.u32 %v705, 7
      %v707 = vsub.s32 0, %v706
      %v708 = vrot.slane %v688, %v707
      %v709 = vlaneseq
      %v710 = vshrl.u32 %v709, 7
      %v711 = vsub.s32 0, %v710
      %v712 = vrot.slane %v702, %v711
      %v713 = vlaneseq
      %v714 = vshrl.u32 %v713, 7
      %v715 = vsub.s32 0, %v714
      %v716 = vrot.slane %v703, %v715
      %v717 = vlaneseq
      %v718 = vshrl.u32 %v717, 7
      %v719 = vsub.s32 0, %v718
      %v720 = vrot.slane %v704, %v719
      %v721 = vlaneseq
      %v722 = vshrl.u32 %v721, 7
      %v723 = vsub.s32 0, %v722
      %v724 = vrot.slane %v695, %v723
      %732 = vrot.lane.b32.xlu0 %v662, 34
      %v733 = vpop.permute.xlu0 %732
      %734 = vrot.lane.b32.xlu0 %v663, 34
      %v735 = vpop.permute.xlu0 %734
      %v738 = vmul.f32 %v708, %v733
      %v739 = vmul.f32 %v708, %v735
      %v740 = vmul.f32 %v712, %v733
      %v741 = vmul.f32 %v712, %v735
      %v742 = vmul.f32 %v716, %v733
      %v743 = vmul.f32 %v716, %v735
      %v744 = vmul.f32 %v720, %v733
      %v745 = vmul.f32 %v720, %v735
      %v746 = vmul.f32 %v724, %v733
      %v747 = vmul.f32 %v724, %v735
      %v748 = vmul.f32 %v738, 1.442695
      %v749 = vpow.pop %v748
      %v750 = vmul.f32 %v739, 1.442695
      %v751 = vpow.pop %v750
      %v752 = vmul.f32 %v740, 1.442695
      %v753 = vpow.pop %v752
      %v754 = vmul.f32 %v741, 1.442695
      %v755 = vpow.pop %v754
      %v756 = vmul.f32 %v742, 1.442695
      %v757 = vpow.pop %v756
      %v758 = vmul.f32 %v743, 1.442695
      %v759 = vpow.pop %v758
      %v760 = vmul.f32 %v744, 1.442695
      %v761 = vpow.pop %v760
      %v762 = vmul.f32 %v745, 1.442695
      %v763 = vpow.pop %v762
      %v764 = vmul.f32 %v746, 1.442695
      %v765 = vpow.pop %v764
      %v766 = vmul.f32 %v747, 1.442695
      %v767 = vpow.pop %v766
      %768 = vrot.lane.b32.xlu0 %v559, 34
      %v769 = vpop.permute.xlu0 %768
      %v771 = vmul.f32 %v661, %v769
      %v773 = vcombine.high %v771, %v771
      %v775 = vunpack.c.l.s4 1966171168
      %v776 = vunpack.c.0.s8 %v775
      %v777 = vlaneseq
      %v778 = vshrl.u32 %v777, 7
      %v779 = vsub.s32 %v776, %v778
      %v780 = vrot.slane %v771, %v779
      %v782 = vunpack.c.l.s4 1966171168
      %v783 = vunpack.c.0.s8 %v782
      %v784 = vlaneseq
      %v785 = vshrl.u32 %v784, 7
      %v786 = vsub.s32 %v783, %v785
      %v787 = vrot.slane %v773, %v786
      %v788 = vcombine.high %v780, %v780
      %v790 = vunpack.c.l.s4 1966171168
      %v791 = vunpack.c.0.s8 %v790
      %v792 = vlaneseq
      %v793 = vshrl.u32 %v792, 7
      %v794 = vsub.s32 %v791, %v793
      %v795 = vrot.slane %v780, %v794
      %v797 = vunpack.c.l.s4 1966171168
      %v798 = vunpack.c.0.s8 %v797
      %v799 = vlaneseq
      %v800 = vshrl.u32 %v799, 7
      %v801 = vsub.s32 %v798, %v800
      %v802 = vrot.slane %v787, %v801
      %v804 = vunpack.c.l.s4 1966171168
      %v805 = vunpack.c.0.s8 %v804
      %v806 = vlaneseq
      %v807 = vshrl.u32 %v806, 7
      %v808 = vsub.s32 %v805, %v807
      %v809 = vrot.slane %v788, %v808
      %v810 = vcombine.high %v795, %v795
      %v811 = vcombine.high %v809, %v809
      %v812 = vlaneseq
      %v813 = vshrl.u32 %v812, 7
      %v814 = vsub.s32 0, %v813
      %v815 = vrot.slane %v645, %v814
      %s817 = sor.u32 256, 2
      %818 = vbcast.lane.b32.xlu0 %v815, %s817
      %v819 = vpop.permute.xlu0 %818
      %s821 = sor.u32 256, 10
      %822 = vbcast.lane.b32.xlu0 %v815, %s821
      %v823 = vpop.permute.xlu0 %822
      %v824 = vlaneseq
      %v825 = vshrl.u32 %v824, 7
      %v826 = vsub.s32 1, %v825
      %v827 = vrot.slane %v645, %v826
      %s829 = sor.u32 256, 2
      %830 = vbcast.lane.b32.xlu0 %v827, %s829
      %v831 = vpop.permute.xlu0 %830
      %s833 = sor.u32 256, 10
      %834 = vbcast.lane.b32.xlu0 %v827, %s833
      %v835 = vpop.permute.xlu0 %834
      %v836 = vlaneseq
      %v837 = vshrl.u32 %v836, 7
      %v838 = vsub.s32 2, %v837
      %v839 = vrot.slane %v645, %v838
      %s841 = sor.u32 256, 2
      %842 = vbcast.lane.b32.xlu0 %v839, %s841
      %v843 = vpop.permute.xlu0 %842
      %s845 = sor.u32 256, 10
      %846 = vbcast.lane.b32.xlu0 %v839, %s845
      %v847 = vpop.permute.xlu0 %846
      %v848 = vlaneseq
      %v849 = vshrl.u32 %v848, 7
      %v850 = vsub.s32 3, %v849
      %v851 = vrot.slane %v645, %v850
      %s853 = sor.u32 256, 2
      %854 = vbcast.lane.b32.xlu0 %v851, %s853
      %v855 = vpop.permute.xlu0 %854
      %s857 = sor.u32 256, 10
      %858 = vbcast.lane.b32.xlu0 %v851, %s857
      %v859 = vpop.permute.xlu0 %858
      %v860 = vlaneseq
      %v861 = vshrl.u32 %v860, 7
      %v862 = vsub.s32 4, %v861
      %v863 = vrot.slane %v645, %v862
      %s865 = sor.u32 256, 2
      %866 = vbcast.lane.b32.xlu0 %v863, %s865
      %v867 = vpop.permute.xlu0 %866
      %s869 = sor.u32 256, 10
      %870 = vbcast.lane.b32.xlu0 %v863, %s869
      %v871 = vpop.permute.xlu0 %870
      %v872 = vlaneseq
      %v873 = vshrl.u32 %v872, 7
      %v874 = vsub.s32 0, %v873
      %v875 = vrot.slane %v795, %v874
      %v876 = vlaneseq
      %v877 = vshrl.u32 %v876, 7
      %v878 = vsub.s32 0, %v877
      %v879 = vrot.slane %v809, %v878
      %v880 = vlaneseq
      %v881 = vshrl.u32 %v880, 7
      %v882 = vsub.s32 0, %v881
      %v883 = vrot.slane %v810, %v882
      %v884 = vlaneseq
      %v885 = vshrl.u32 %v884, 7
      %v886 = vsub.s32 0, %v885
      %v887 = vrot.slane %v811, %v886
      %v888 = vlaneseq
      %v889 = vshrl.u32 %v888, 7
      %v890 = vsub.s32 0, %v889
      %v891 = vrot.slane %v802, %v890
      %v897 = vmul.f32 %v875, %v819
      %v898 = vmul.f32 %v875, %v823
      %v899 = vmul.f32 %v879, %v831
      %v900 = vmul.f32 %v879, %v835
      %v901 = vmul.f32 %v883, %v843
      %v902 = vmul.f32 %v883, %v847
      %v903 = vmul.f32 %v887, %v855
      %v904 = vmul.f32 %v887, %v859
      %v905 = vmul.f32 %v891, %v867
      %v906 = vmul.f32 %v891, %v871
      %s908 = sor.u32 256, 18
      %909 = vbcast.lane.b32.xlu0 %v815, %s908
      %v910 = vpop.permute.xlu0 %909
      %s912 = sor.u32 256, 26
      %913 = vbcast.lane.b32.xlu0 %v815, %s912
      %v914 = vpop.permute.xlu0 %913
      %s916 = sor.u32 256, 18
      %917 = vbcast.lane.b32.xlu0 %v827, %s916
      %v918 = vpop.permute.xlu0 %917
      %s920 = sor.u32 256, 26
      %921 = vbcast.lane.b32.xlu0 %v827, %s920
      %v922 = vpop.permute.xlu0 %921
      %s924 = sor.u32 256, 18
      %925 = vbcast.lane.b32.xlu0 %v839, %s924
      %v926 = vpop.permute.xlu0 %925
      %s928 = sor.u32 256, 26
      %929 = vbcast.lane.b32.xlu0 %v839, %s928
      %v930 = vpop.permute.xlu0 %929
      %s932 = sor.u32 256, 18
      %933 = vbcast.lane.b32.xlu0 %v851, %s932
      %v934 = vpop.permute.xlu0 %933
      %s936 = sor.u32 256, 26
      %937 = vbcast.lane.b32.xlu0 %v851, %s936
      %v938 = vpop.permute.xlu0 %937
      %s940 = sor.u32 256, 18
      %941 = vbcast.lane.b32.xlu0 %v863, %s940
      %v942 = vpop.permute.xlu0 %941
      %s944 = sor.u32 256, 26
      %945 = vbcast.lane.b32.xlu0 %v863, %s944
      %v946 = vpop.permute.xlu0 %945
      %v947 = vmul.f32 %v749, 0.0
      %v948 = vmul.f32 %v751, 0.0
      %v949 = vadd.f32 %v947, %v897
      %v950 = vadd.f32 %v948, %v898
      %v951 = vmul.f32 %v949, %v910
      %v952 = vmul.f32 %v950, %v914
      %vm953 = vcmask 802064
      %v954 = vsel %vm953, %v951, 0.0
      %v955 = vsel %vm953, %v952, 0.0
      %v956 = vadd.f32 %v954, %v955
      %v957 = vrot.slane %v956, 4
      %v958 = vadd.f32 %v956, %v957
      %v959 = vrot.slane %v958, 2
      %v960 = vadd.f32 %v958, %v959
      %v961 = vrot.slane %v960, 1
      %v962 = vadd.f32 %v960, %v961
      %v963 = vmul.f32 %v664, %v559
      %965 = vrot.lane.b32.xlu0 %v963, 34
      %v966 = vpop.permute.xlu0 %965
      %v968 = vadd.f32 %v962, %v966
      %v969 = vmul.f32 %v753, %v949
      %v970 = vmul.f32 %v755, %v950
      %v971 = vadd.f32 %v969, %v899
      %v972 = vadd.f32 %v970, %v900
      %v973 = vmul.f32 %v971, %v918
      %v974 = vmul.f32 %v972, %v922
      %v975 = vsel %vm953, %v973, 0.0
      %v976 = vsel %vm953, %v974, 0.0
      %v977 = vadd.f32 %v975, %v976
      %v978 = vrot.slane %v977, 4
      %v979 = vadd.f32 %v977, %v978
      %v980 = vrot.slane %v979, 2
      %v981 = vadd.f32 %v979, %v980
      %v982 = vrot.slane %v981, 1
      %v983 = vadd.f32 %v981, %v982
      %v984 = vrot.slane %v559, 1
      %v986 = vmul.f32 %v664, %v984
      %988 = vrot.lane.b32.xlu0 %v986, 34
      %v989 = vpop.permute.xlu0 %988
      %v991 = vadd.f32 %v983, %v989
      %v992 = vmul.f32 %v757, %v971
      %v993 = vmul.f32 %v759, %v972
      %v994 = vadd.f32 %v992, %v901
      %v995 = vadd.f32 %v993, %v902
      %v996 = vmul.f32 %v994, %v926
      %v997 = vmul.f32 %v995, %v930
      %v998 = vsel %vm953, %v996, 0.0
      %v999 = vsel %vm953, %v997, 0.0
      %v1000 = vadd.f32 %v998, %v999
      %v1001 = vrot.slane %v1000, 4
      %v1002 = vadd.f32 %v1000, %v1001
      %v1003 = vrot.slane %v1002, 2
      %v1004 = vadd.f32 %v1002, %v1003
      %v1005 = vrot.slane %v1004, 1
      %v1006 = vadd.f32 %v1004, %v1005
      %v1007 = vrot.slane %v559, 2
      %v1009 = vmul.f32 %v664, %v1007
      %1011 = vrot.lane.b32.xlu0 %v1009, 34
      %v1012 = vpop.permute.xlu0 %1011
      %v1014 = vadd.f32 %v1006, %v1012
      %v1015 = vmul.f32 %v761, %v994
      %v1016 = vmul.f32 %v763, %v995
      %v1017 = vadd.f32 %v1015, %v903
      %v1018 = vadd.f32 %v1016, %v904
      %v1019 = vmul.f32 %v1017, %v934
      %v1020 = vmul.f32 %v1018, %v938
      %v1021 = vsel %vm953, %v1019, 0.0
      %v1022 = vsel %vm953, %v1020, 0.0
      %v1023 = vadd.f32 %v1021, %v1022
      %v1024 = vrot.slane %v1023, 4
      %v1025 = vadd.f32 %v1023, %v1024
      %v1026 = vrot.slane %v1025, 2
      %v1027 = vadd.f32 %v1025, %v1026
      %v1028 = vrot.slane %v1027, 1
      %v1029 = vadd.f32 %v1027, %v1028
      %v1030 = vrot.slane %v559, 3
      %v1032 = vmul.f32 %v664, %v1030
      %1034 = vrot.lane.b32.xlu0 %v1032, 34
      %v1035 = vpop.permute.xlu0 %1034
      %v1037 = vadd.f32 %v1029, %v1035
      %v1038 = vmul.f32 %v765, %v1017
      %v1039 = vmul.f32 %v767, %v1018
      %v1040 = vadd.f32 %v1038, %v905
      %v1041 = vadd.f32 %v1039, %v906
      %v1042 = vmul.f32 %v1040, %v942
      %v1043 = vmul.f32 %v1041, %v946
      %v1044 = vsel %vm953, %v1042, 0.0
      %v1045 = vsel %vm953, %v1043, 0.0
      %v1046 = vadd.f32 %v1044, %v1045
      %v1047 = vrot.slane %v1046, 4
      %v1048 = vadd.f32 %v1046, %v1047
      %v1049 = vrot.slane %v1048, 2
      %v1050 = vadd.f32 %v1048, %v1049
      %v1051 = vrot.slane %v1050, 1
      %v1052 = vadd.f32 %v1050, %v1051
      %v1053 = vrot.slane %v559, 4
      %v1055 = vmul.f32 %v664, %v1053
      %1057 = vrot.lane.b32.xlu0 %v1055, 34
      %v1058 = vpop.permute.xlu0 %1057
      %v1060 = vadd.f32 %v1052, %v1058
      %v1062 = vrot.slane %v991, 7
      %v1065 = vrot.slane %v1014, 6
      %v1068 = vrot.slane %v1037, 5
      %v1071 = vrot.slane %v1060, 4
      %vm1073 = vcmask 1040384
      %v1074 = vsel %vm1073, %v968, %v1062
      %vm1075 = vcmask 1041408
      %v1076 = vsel %vm1075, %v1074, %v1065
      %vm1077 = vcmask 1042432
      %v1078 = vsel %vm1077, %v1076, %v1068
      %vm1079 = vcmask 1043456
      %v1080 = vsel %vm1079, %v1078, %v1071
      %v1081 = vld [vmem:[%s7] sm:$0xff]
      %v1082 = vld [vmem:[%s7 + $0x8] sm:$0xff]
      %v1083 = vld [vmem:[%s7 + $0x10] sm:$0xff]
      %v1084 = vld [vmem:[%s7 + $0x18] sm:$0xff]
      %v1085 = vld [vmem:[%s7 + $0x20] sm:$0xff]
      %v1086 = vld [vmem:[%s7 + $0x28] sm:$0xff]
      %v1087 = vld [vmem:[%s7 + $0x30] sm:$0xff]
      %v1088 = vld [vmem:[%s7 + $0x38] sm:$0xff]
      %v1089 = vld [vmem:[%s7 + $0x40] sm:$0x1]
      %v1090 = vlaneseq
      %v1091 = vshrl.u32 %v1090, 7
      %v1092 = vsub.s32 0, %v1091
      %v1093 = vrot.slane %v1089, %v1092
      %v1095 = vrot.slane %v560, 4
      %v1096 = vsel %vm1079, %v1053, %v1095
      %v1097 = vsel %vm574, %v1096, 0
      %1099 = vmatprep.subr.mxu0 0.0
      %1100 = vmatpush1.msra.mxu0 0.0
      %1101 = vmatprep.subr.mxu0 0.0
      %1102 = vmatpush1.msra.mxu0 0.0
      %1103 = vmatprep.subr.mxu0 0.0
      %1104 = vmatpush1.msra.mxu0 0.0
      %1105 = vmatprep.subr.mxu0 0.0
      %1106 = vmatpush1.msra.mxu0 0.0
      %1107 = vmatprep.subr.mxu0 0.0
      %1108 = vmatpush1.msra.mxu0 0.0
      %1109 = vmatprep.subr.mxu0 0.0
      %1110 = vmatpush1.msra.mxu0 0.0
      %1111 = vmatprep.subr.mxu0 0.0
      %1112 = vmatpush1.msra.mxu0 0.0
      %1113 = vmatprep.subr.mxu0 0.0
      %1114 = vmatpush1.msra.mxu0 0.0
      %1115 = vmatprep.subr.mxu0 0.0
      %1116 = vmatpush1.msra.mxu0 %v1088
      %1117 = vmatprep.subr.mxu0 0.0
      %1118 = vmatpush1.msra.mxu0 %v1087
      %1119 = vmatprep.subr.mxu0 0.0
      %1120 = vmatpush1.msra.mxu0 %v1086
      %1121 = vmatprep.subr.mxu0 0.0
      %1122 = vmatpush1.msra.mxu0 %v1085
      %1123 = vmatprep.subr.mxu0 0.0
      %1124 = vmatpush1.msra.mxu0 %v1084
      %1125 = vmatprep.subr.mxu0 0.0
      %1126 = vmatpush1.msra.mxu0 %v1083
      %1127 = vmatprep.subr.mxu0 0.0
      %1128 = vmatpush1.msra.mxu0 %v1082
      %1129 = vmatprep.subr.mxu0 0.0
      %1130 = vmatpush1.msra.mxu0 %v1081
      %1131 = vmatprep.subr.mxu0 0.0
      %1132 = vmatpush2.msra.mxu0 0.0
      %1133 = vmatprep.subr.mxu0 0.0
      %1134 = vmatpush2.msra.mxu0 0.0
      %1135 = vmatprep.subr.mxu0 0.0
      %1136 = vmatpush2.msra.mxu0 0.0
      %1137 = vmatprep.subr.mxu0 0.0
      %1138 = vmatpush2.msra.mxu0 0.0
      %1139 = vmatprep.subr.mxu0 0.0
      %1140 = vmatpush2.msra.mxu0 0.0
      %1141 = vmatprep.subr.mxu0 0.0
      %1142 = vmatpush2.msra.mxu0 0.0
      %1143 = vmatprep.subr.mxu0 0.0
      %1144 = vmatpush2.msra.mxu0 0.0
      %1145 = vmatprep.subr.mxu0 0.0
      %1146 = vmatpush2.msra.mxu0 0.0
      %1147 = vmatprep.subr.mxu0 0.0
      %1148 = vmatpush2.msra.mxu0 0.0
      %1149 = vmatprep.subr.mxu0 0.0
      %1150 = vmatpush2.msra.mxu0 0.0
      %1151 = vmatprep.subr.mxu0 0.0
      %1152 = vmatpush2.msra.mxu0 0.0
      %1153 = vmatprep.subr.mxu0 0.0
      %1154 = vmatpush2.msra.mxu0 0.0
      %1155 = vmatprep.subr.mxu0 0.0
      %1156 = vmatpush2.msra.mxu0 0.0
      %1157 = vmatprep.subr.mxu0 0.0
      %1158 = vmatpush2.msra.mxu0 0.0
      %1159 = vmatprep.subr.mxu0 0.0
      %1160 = vmatpush2.msra.mxu0 0.0
      %1161 = vmatprep.subr.mxu0 0.0
      %1162 = vmatpush2.msra.mxu0 0.0
      %1163 = vmatprep.mubr.f32.mxu0 0.0
      %1164 = vmatmul.mubr.f32.gmra.mxu0 %v1097
      %v1165 = vpop.f32.mrf.mxu0
      %v1166 = vadd.f32 %v1093, %v1165
      %v1167 = vpop.f32.mrf.mxu0
      %1168 = vdwg.mxu0
      %vm1169 = vcmp.gt.f32.partialorder %v1166, 20.0
      %v1170 = vmin.f32 %v1166, 20.0
      %v1171 = vmul.f32 %v1170, 1.442695
      %v1172 = vpow.pop %v1171
      %v1173 = vadd.f32 %v1172, 1.0
      %v1174 = vlog2.pop %v1173
      %v1175 = vmul.f32 %v1174, 0.6931472
      %v1176 = vmul.f32 -0.5, %v1172
      %v1177 = vadd.f32 %v1176, 1.0
      %v1178 = vmul.f32 %v1177, %v1172
      %v1179 = vand.u32 2147483647, %v1172
      %vm1180 = vcmp.lt.f32.partialorder %v1179, 0.0004427343
      %v1181 = vsel %vm1180, %v1178, %v1175
      %v1182 = vsel %vm1169, %v1166, %v1181
      %v1183 = vld [vmem:[%s8] sm:$0xff]
      %v1184 = vld [vmem:[%s8 + $0x8] sm:$0xff]
      %v1185 = vld [vmem:[%s8 + $0x10] sm:$0x1]
      %v1187 = vcombine.high %v1182, %v1182
      %v1189 = vunpack.c.l.s4 1966171168
      %v1190 = vunpack.c.0.s8 %v1189
      %v1191 = vlaneseq
      %v1192 = vshrl.u32 %v1191, 7
      %v1193 = vsub.s32 %v1190, %v1192
      %v1194 = vrot.slane %v1182, %v1193
      %v1196 = vunpack.c.l.s4 1966171168
      %v1197 = vunpack.c.0.s8 %v1196
      %v1198 = vlaneseq
      %v1199 = vshrl.u32 %v1198, 7
      %v1200 = vsub.s32 %v1197, %v1199
      %v1201 = vrot.slane %v1187, %v1200
      %v1202 = vcombine.high %v1194, %v1194
      %v1204 = vunpack.c.l.s4 1966171168
      %v1205 = vunpack.c.0.s8 %v1204
      %v1206 = vlaneseq
      %v1207 = vshrl.u32 %v1206, 7
      %v1208 = vsub.s32 %v1205, %v1207
      %v1209 = vrot.slane %v1194, %v1208
      %v1211 = vunpack.c.l.s4 1966171168
      %v1212 = vunpack.c.0.s8 %v1211
      %v1213 = vlaneseq
      %v1214 = vshrl.u32 %v1213, 7
      %v1215 = vsub.s32 %v1212, %v1214
      %v1216 = vrot.slane %v1201, %v1215
      %v1218 = vunpack.c.l.s4 1966171168
      %v1219 = vunpack.c.0.s8 %v1218
      %v1220 = vlaneseq
      %v1221 = vshrl.u32 %v1220, 7
      %v1222 = vsub.s32 %v1219, %v1221
      %v1223 = vrot.slane %v1202, %v1222
      %v1224 = vcombine.high %v1209, %v1209
      %v1225 = vcombine.high %v1223, %v1223
      %v1226 = vlaneseq
      %v1227 = vshrl.u32 %v1226, 7
      %v1228 = vsub.s32 0, %v1227
      %v1229 = vrot.slane %v1209, %v1228
      %v1230 = vlaneseq
      %v1231 = vshrl.u32 %v1230, 7
      %v1232 = vsub.s32 0, %v1231
      %v1233 = vrot.slane %v1223, %v1232
      %v1234 = vlaneseq
      %v1235 = vshrl.u32 %v1234, 7
      %v1236 = vsub.s32 0, %v1235
      %v1237 = vrot.slane %v1224, %v1236
      %v1238 = vlaneseq
      %v1239 = vshrl.u32 %v1238, 7
      %v1240 = vsub.s32 0, %v1239
      %v1241 = vrot.slane %v1225, %v1240
      %v1242 = vlaneseq
      %v1243 = vshrl.u32 %v1242, 7
      %v1244 = vsub.s32 0, %v1243
      %v1245 = vrot.slane %v1216, %v1244
      %1253 = vrot.lane.b32.xlu0 %v1183, 34
      %v1254 = vpop.permute.xlu0 %1253
      %1255 = vrot.lane.b32.xlu0 %v1184, 34
      %v1256 = vpop.permute.xlu0 %1255
      %v1259 = vmul.f32 %v1229, %v1254
      %v1260 = vmul.f32 %v1229, %v1256
      %v1261 = vmul.f32 %v1233, %v1254
      %v1262 = vmul.f32 %v1233, %v1256
      %v1263 = vmul.f32 %v1237, %v1254
      %v1264 = vmul.f32 %v1237, %v1256
      %v1265 = vmul.f32 %v1241, %v1254
      %v1266 = vmul.f32 %v1241, %v1256
      %v1267 = vmul.f32 %v1245, %v1254
      %v1268 = vmul.f32 %v1245, %v1256
      %v1269 = vmul.f32 %v1259, 1.442695
      %v1270 = vpow.pop %v1269
      %v1271 = vmul.f32 %v1260, 1.442695
      %v1272 = vpow.pop %v1271
      %v1273 = vmul.f32 %v1261, 1.442695
      %v1274 = vpow.pop %v1273
      %v1275 = vmul.f32 %v1262, 1.442695
      %v1276 = vpow.pop %v1275
      %v1277 = vmul.f32 %v1263, 1.442695
      %v1278 = vpow.pop %v1277
      %v1279 = vmul.f32 %v1264, 1.442695
      %v1280 = vpow.pop %v1279
      %v1281 = vmul.f32 %v1265, 1.442695
      %v1282 = vpow.pop %v1281
      %v1283 = vmul.f32 %v1266, 1.442695
      %v1284 = vpow.pop %v1283
      %v1285 = vmul.f32 %v1267, 1.442695
      %v1286 = vpow.pop %v1285
      %v1287 = vmul.f32 %v1268, 1.442695
      %v1288 = vpow.pop %v1287
      %1289 = vrot.lane.b32.xlu0 %v1096, 34
      %v1290 = vpop.permute.xlu0 %1289
      %v1292 = vmul.f32 %v1182, %v1290
      %v1294 = vcombine.high %v1292, %v1292
      %v1296 = vunpack.c.l.s4 1966171168
      %v1297 = vunpack.c.0.s8 %v1296
      %v1298 = vlaneseq
      %v1299 = vshrl.u32 %v1298, 7
      %v1300 = vsub.s32 %v1297, %v1299
      %v1301 = vrot.slane %v1292, %v1300
      %v1303 = vunpack.c.l.s4 1966171168
      %v1304 = vunpack.c.0.s8 %v1303
      %v1305 = vlaneseq
      %v1306 = vshrl.u32 %v1305, 7
      %v1307 = vsub.s32 %v1304, %v1306
      %v1308 = vrot.slane %v1294, %v1307
      %v1309 = vcombine.high %v1301, %v1301
      %v1311 = vunpack.c.l.s4 1966171168
      %v1312 = vunpack.c.0.s8 %v1311
      %v1313 = vlaneseq
      %v1314 = vshrl.u32 %v1313, 7
      %v1315 = vsub.s32 %v1312, %v1314
      %v1316 = vrot.slane %v1301, %v1315
      %v1318 = vunpack.c.l.s4 1966171168
      %v1319 = vunpack.c.0.s8 %v1318
      %v1320 = vlaneseq
      %v1321 = vshrl.u32 %v1320, 7
      %v1322 = vsub.s32 %v1319, %v1321
      %v1323 = vrot.slane %v1308, %v1322
      %v1325 = vunpack.c.l.s4 1966171168
      %v1326 = vunpack.c.0.s8 %v1325
      %v1327 = vlaneseq
      %v1328 = vshrl.u32 %v1327, 7
      %v1329 = vsub.s32 %v1326, %v1328
      %v1330 = vrot.slane %v1309, %v1329
      %v1331 = vcombine.high %v1316, %v1316
      %v1332 = vcombine.high %v1330, %v1330
      %v1333 = vlaneseq
      %v1334 = vshrl.u32 %v1333, 7
      %v1335 = vsub.s32 0, %v1334
      %v1336 = vrot.slane %v1166, %v1335
      %s1338 = sor.u32 256, 2
      %1339 = vbcast.lane.b32.xlu0 %v1336, %s1338
      %v1340 = vpop.permute.xlu0 %1339
      %s1342 = sor.u32 256, 10
      %1343 = vbcast.lane.b32.xlu0 %v1336, %s1342
      %v1344 = vpop.permute.xlu0 %1343
      %v1345 = vlaneseq
      %v1346 = vshrl.u32 %v1345, 7
      %v1347 = vsub.s32 1, %v1346
      %v1348 = vrot.slane %v1166, %v1347
      %s1350 = sor.u32 256, 2
      %1351 = vbcast.lane.b32.xlu0 %v1348, %s1350
      %v1352 = vpop.permute.xlu0 %1351
      %s1354 = sor.u32 256, 10
      %1355 = vbcast.lane.b32.xlu0 %v1348, %s1354
      %v1356 = vpop.permute.xlu0 %1355
      %v1357 = vlaneseq
      %v1358 = vshrl.u32 %v1357, 7
      %v1359 = vsub.s32 2, %v1358
      %v1360 = vrot.slane %v1166, %v1359
      %s1362 = sor.u32 256, 2
      %1363 = vbcast.lane.b32.xlu0 %v1360, %s1362
      %v1364 = vpop.permute.xlu0 %1363
      %s1366 = sor.u32 256, 10
      %1367 = vbcast.lane.b32.xlu0 %v1360, %s1366
      %v1368 = vpop.permute.xlu0 %1367
      %v1369 = vlaneseq
      %v1370 = vshrl.u32 %v1369, 7
      %v1371 = vsub.s32 3, %v1370
      %v1372 = vrot.slane %v1166, %v1371
      %s1374 = sor.u32 256, 2
      %1375 = vbcast.lane.b32.xlu0 %v1372, %s1374
      %v1376 = vpop.permute.xlu0 %1375
      %s1378 = sor.u32 256, 10
      %1379 = vbcast.lane.b32.xlu0 %v1372, %s1378
      %v1380 = vpop.permute.xlu0 %1379
      %v1381 = vlaneseq
      %v1382 = vshrl.u32 %v1381, 7
      %v1383 = vsub.s32 4, %v1382
      %v1384 = vrot.slane %v1166, %v1383
      %s1386 = sor.u32 256, 2
      %1387 = vbcast.lane.b32.xlu0 %v1384, %s1386
      %v1388 = vpop.permute.xlu0 %1387
      %s1390 = sor.u32 256, 10
      %1391 = vbcast.lane.b32.xlu0 %v1384, %s1390
      %v1392 = vpop.permute.xlu0 %1391
      %v1393 = vlaneseq
      %v1394 = vshrl.u32 %v1393, 7
      %v1395 = vsub.s32 0, %v1394
      %v1396 = vrot.slane %v1316, %v1395
      %v1397 = vlaneseq
      %v1398 = vshrl.u32 %v1397, 7
      %v1399 = vsub.s32 0, %v1398
      %v1400 = vrot.slane %v1330, %v1399
      %v1401 = vlaneseq
      %v1402 = vshrl.u32 %v1401, 7
      %v1403 = vsub.s32 0, %v1402
      %v1404 = vrot.slane %v1331, %v1403
      %v1405 = vlaneseq
      %v1406 = vshrl.u32 %v1405, 7
      %v1407 = vsub.s32 0, %v1406
      %v1408 = vrot.slane %v1332, %v1407
      %v1409 = vlaneseq
      %v1410 = vshrl.u32 %v1409, 7
      %v1411 = vsub.s32 0, %v1410
      %v1412 = vrot.slane %v1323, %v1411
      %v1418 = vmul.f32 %v1396, %v1340
      %v1419 = vmul.f32 %v1396, %v1344
      %v1420 = vmul.f32 %v1400, %v1352
      %v1421 = vmul.f32 %v1400, %v1356
      %v1422 = vmul.f32 %v1404, %v1364
      %v1423 = vmul.f32 %v1404, %v1368
      %v1424 = vmul.f32 %v1408, %v1376
      %v1425 = vmul.f32 %v1408, %v1380
      %v1426 = vmul.f32 %v1412, %v1388
      %v1427 = vmul.f32 %v1412, %v1392
      %s1429 = sor.u32 256, 18
      %1430 = vbcast.lane.b32.xlu0 %v1336, %s1429
      %v1431 = vpop.permute.xlu0 %1430
      %s1433 = sor.u32 256, 26
      %1434 = vbcast.lane.b32.xlu0 %v1336, %s1433
      %v1435 = vpop.permute.xlu0 %1434
      %s1437 = sor.u32 256, 18
      %1438 = vbcast.lane.b32.xlu0 %v1348, %s1437
      %v1439 = vpop.permute.xlu0 %1438
      %s1441 = sor.u32 256, 26
      %1442 = vbcast.lane.b32.xlu0 %v1348, %s1441
      %v1443 = vpop.permute.xlu0 %1442
      %s1445 = sor.u32 256, 18
      %1446 = vbcast.lane.b32.xlu0 %v1360, %s1445
      %v1447 = vpop.permute.xlu0 %1446
      %s1449 = sor.u32 256, 26
      %1450 = vbcast.lane.b32.xlu0 %v1360, %s1449
      %v1451 = vpop.permute.xlu0 %1450
      %s1453 = sor.u32 256, 18
      %1454 = vbcast.lane.b32.xlu0 %v1372, %s1453
      %v1455 = vpop.permute.xlu0 %1454
      %s1457 = sor.u32 256, 26
      %1458 = vbcast.lane.b32.xlu0 %v1372, %s1457
      %v1459 = vpop.permute.xlu0 %1458
      %s1461 = sor.u32 256, 18
      %1462 = vbcast.lane.b32.xlu0 %v1384, %s1461
      %v1463 = vpop.permute.xlu0 %1462
      %s1465 = sor.u32 256, 26
      %1466 = vbcast.lane.b32.xlu0 %v1384, %s1465
      %v1467 = vpop.permute.xlu0 %1466
      %v1468 = vmul.f32 %v1286, 0.0
      %v1469 = vmul.f32 %v1288, 0.0
      %v1470 = vadd.f32 %v1468, %v1426
      %v1471 = vadd.f32 %v1469, %v1427
      %v1472 = vmul.f32 %v1470, %v1463
      %v1473 = vmul.f32 %v1471, %v1467
      %v1474 = vsel %vm953, %v1472, 0.0
      %v1475 = vsel %vm953, %v1473, 0.0
      %v1476 = vadd.f32 %v1474, %v1475
      %v1477 = vrot.slane %v1476, 4
      %v1478 = vadd.f32 %v1476, %v1477
      %v1479 = vrot.slane %v1478, 2
      %v1480 = vadd.f32 %v1478, %v1479
      %v1481 = vrot.slane %v1480, 1
      %v1482 = vadd.f32 %v1480, %v1481
      %v1483 = vmul.f32 %v1185, %v560
      %1485 = vrot.lane.b32.xlu0 %v1483, 34
      %v1486 = vpop.permute.xlu0 %1485
      %v1488 = vadd.f32 %v1482, %v1486
      %v1489 = vmul.f32 %v1282, %v1470
      %v1490 = vmul.f32 %v1284, %v1471
      %v1491 = vadd.f32 %v1489, %v1424
      %v1492 = vadd.f32 %v1490, %v1425
      %v1493 = vmul.f32 %v1491, %v1455
      %v1494 = vmul.f32 %v1492, %v1459
      %v1495 = vsel %vm953, %v1493, 0.0
      %v1496 = vsel %vm953, %v1494, 0.0
      %v1497 = vadd.f32 %v1495, %v1496
      %v1498 = vrot.slane %v1497, 4
      %v1499 = vadd.f32 %v1497, %v1498
      %v1500 = vrot.slane %v1499, 2
      %v1501 = vadd.f32 %v1499, %v1500
      %v1502 = vrot.slane %v1501, 1
      %v1503 = vadd.f32 %v1501, %v1502
      %v1504 = vrot.slane %v559, 7
      %v1506 = vmul.f32 %v1185, %v1504
      %1508 = vrot.lane.b32.xlu0 %v1506, 34
      %v1509 = vpop.permute.xlu0 %1508
      %v1511 = vadd.f32 %v1503, %v1509
      %v1512 = vmul.f32 %v1278, %v1491
      %v1513 = vmul.f32 %v1280, %v1492
      %v1514 = vadd.f32 %v1512, %v1422
      %v1515 = vadd.f32 %v1513, %v1423
      %v1516 = vmul.f32 %v1514, %v1447
      %v1517 = vmul.f32 %v1515, %v1451
      %v1518 = vsel %vm953, %v1516, 0.0
      %v1519 = vsel %vm953, %v1517, 0.0
      %v1520 = vadd.f32 %v1518, %v1519
      %v1521 = vrot.slane %v1520, 4
      %v1522 = vadd.f32 %v1520, %v1521
      %v1523 = vrot.slane %v1522, 2
      %v1524 = vadd.f32 %v1522, %v1523
      %v1525 = vrot.slane %v1524, 1
      %v1526 = vadd.f32 %v1524, %v1525
      %v1527 = vrot.slane %v559, 6
      %v1529 = vmul.f32 %v1185, %v1527
      %1531 = vrot.lane.b32.xlu0 %v1529, 34
      %v1532 = vpop.permute.xlu0 %1531
      %v1534 = vadd.f32 %v1526, %v1532
      %v1535 = vmul.f32 %v1274, %v1514
      %v1536 = vmul.f32 %v1276, %v1515
      %v1537 = vadd.f32 %v1535, %v1420
      %v1538 = vadd.f32 %v1536, %v1421
      %v1539 = vmul.f32 %v1537, %v1439
      %v1540 = vmul.f32 %v1538, %v1443
      %v1541 = vsel %vm953, %v1539, 0.0
      %v1542 = vsel %vm953, %v1540, 0.0
      %v1543 = vadd.f32 %v1541, %v1542
      %v1544 = vrot.slane %v1543, 4
      %v1545 = vadd.f32 %v1543, %v1544
      %v1546 = vrot.slane %v1545, 2
      %v1547 = vadd.f32 %v1545, %v1546
      %v1548 = vrot.slane %v1547, 1
      %v1549 = vadd.f32 %v1547, %v1548
      %v1550 = vrot.slane %v559, 5
      %v1552 = vmul.f32 %v1185, %v1550
      %1554 = vrot.lane.b32.xlu0 %v1552, 34
      %v1555 = vpop.permute.xlu0 %1554
      %v1557 = vadd.f32 %v1549, %v1555
      %v1558 = vmul.f32 %v1270, %v1537
      %v1559 = vmul.f32 %v1272, %v1538
      %v1560 = vadd.f32 %v1558, %v1418
      %v1561 = vadd.f32 %v1559, %v1419
      %v1562 = vmul.f32 %v1560, %v1431
      %v1563 = vmul.f32 %v1561, %v1435
      %v1564 = vsel %vm953, %v1562, 0.0
      %v1565 = vsel %vm953, %v1563, 0.0
      %v1566 = vadd.f32 %v1564, %v1565
      %v1567 = vrot.slane %v1566, 4
      %v1568 = vadd.f32 %v1566, %v1567
      %v1569 = vrot.slane %v1568, 2
      %v1570 = vadd.f32 %v1568, %v1569
      %v1571 = vrot.slane %v1570, 1
      %v1572 = vadd.f32 %v1570, %v1571
      %v1573 = vmul.f32 %v1185, %v1053
      %1575 = vrot.lane.b32.xlu0 %v1573, 34
      %v1576 = vpop.permute.xlu0 %1575
      %v1578 = vadd.f32 %v1572, %v1576
      %v1580 = vrot.slane %v1511, 7
      %v1583 = vrot.slane %v1534, 6
      %v1586 = vrot.slane %v1557, 5
      %v1589 = vrot.slane %v1578, 4
      %v1591 = vsel %vm1073, %v1488, %v1580
      %v1592 = vsel %vm1075, %v1591, %v1583
      %v1593 = vsel %vm1077, %v1592, %v1586
      %v1594 = vsel %vm1079, %v1593, %v1589
      %v1595 = vld [vmem:[%s3] sm:$0x1f]
      %1597 = vset.pattern.permute.xlu0 0
      %1598 = vperm.xlu0 %1597, %v1595
      %v1599 = vpop.permute.xlu0 %1598
      %v1601 = vmul.f32 %v1080, %v1599
      %v1602 = vld [vmem:[%s4] sm:$0x1f]
      %1604 = vset.pattern.permute.xlu0 0
      %1605 = vperm.xlu0 %1604, %v1602
      %v1606 = vpop.permute.xlu0 %1605
      %v1608 = vmul.f32 %v1594, %v1606
      %1610 = vrot.lane.b32.xlu0 %v1601, 94
      %v1611 = vpop.permute.xlu0 %1610
      %1614 = vrot.lane.b32.xlu0 %v1608, 30
      %v1615 = vpop.permute.xlu0 %1614
      %v1617 = vsel %vm574, %v1611, %v1615
      %v1618 = vld [vmem:[%s9] sm:$0xff]
      %v1619 = vld [vmem:[%s9 + $0x8] sm:$0xff]
      %v1620 = vld [vmem:[%s9 + $0x10] sm:$0xff]
      %v1621 = vld [vmem:[%s9 + $0x18] sm:$0xff]
      %v1622 = vld [vmem:[%s9 + $0x20] sm:$0xff]
      %v1623 = vld [vmem:[%s9 + $0x28] sm:$0xff]
      %v1624 = vld [vmem:[%s9 + $0x30] sm:$0xff]
      %v1625 = vld [vmem:[%s9 + $0x38] sm:$0xff]
      %v1626 = vld [vmem:[%s9 + $0x40] sm:$0xff]
      %v1627 = vld [vmem:[%s9 + $0x48] sm:$0xff]
      %v1628 = vld [vmem:[%s9 + $0x50] sm:$0xff]
      %v1629 = vld [vmem:[%s9 + $0x58] sm:$0xff]
      %v1630 = vld [vmem:[%s9 + $0x60] sm:$0xff]
      %v1631 = vld [vmem:[%s9 + $0x68] sm:$0xff]
      %v1632 = vld [vmem:[%s9 + $0x70] sm:$0xff]
      %v1633 = vld [vmem:[%s9 + $0x78] sm:$0xff]
      %v1634 = vld [vmem:[%s9 + $0x80] sm:$0x1]
      %v1635 = vlaneseq
      %v1636 = vshrl.u32 %v1635, 7
      %v1637 = vsub.s32 0, %v1636
      %v1638 = vrot.slane %v1634, %v1637
      %1639 = vmatprep.subr.mxu0 0.0
      %1640 = vmatpush1.msra.mxu0 %v1633
      %1641 = vmatprep.subr.mxu0 0.0
      %1642 = vmatpush1.msra.mxu0 %v1632
      %1643 = vmatprep.subr.mxu0 0.0
      %1644 = vmatpush1.msra.mxu0 %v1631
      %1645 = vmatprep.subr.mxu0 0.0
      %1646 = vmatpush1.msra.mxu0 %v1630
      %1647 = vmatprep.subr.mxu0 0.0
      %1648 = vmatpush1.msra.mxu0 %v1629
      %1649 = vmatprep.subr.mxu0 0.0
      %1650 = vmatpush1.msra.mxu0 %v1628
      %1651 = vmatprep.subr.mxu0 0.0
      %1652 = vmatpush1.msra.mxu0 %v1627
      %1653 = vmatprep.subr.mxu0 0.0
      %1654 = vmatpush1.msra.mxu0 %v1626
      %1655 = vmatprep.subr.mxu0 0.0
      %1656 = vmatpush1.msra.mxu0 %v1625
      %1657 = vmatprep.subr.mxu0 0.0
      %1658 = vmatpush1.msra.mxu0 %v1624
      %1659 = vmatprep.subr.mxu0 0.0
      %1660 = vmatpush1.msra.mxu0 %v1623
      %1661 = vmatprep.subr.mxu0 0.0
      %1662 = vmatpush1.msra.mxu0 %v1622
      %1663 = vmatprep.subr.mxu0 0.0
      %1664 = vmatpush1.msra.mxu0 %v1621
      %1665 = vmatprep.subr.mxu0 0.0
      %1666 = vmatpush1.msra.mxu0 %v1620
      %1667 = vmatprep.subr.mxu0 0.0
      %1668 = vmatpush1.msra.mxu0 %v1619
      %1669 = vmatprep.subr.mxu0 0.0
      %1670 = vmatpush1.msra.mxu0 %v1618
      %1671 = vmatprep.subr.mxu0 0.0
      %1672 = vmatpush2.msra.mxu0 0.0
      %1673 = vmatprep.subr.mxu0 0.0
      %1674 = vmatpush2.msra.mxu0 0.0
      %1675 = vmatprep.subr.mxu0 0.0
      %1676 = vmatpush2.msra.mxu0 0.0
      %1677 = vmatprep.subr.mxu0 0.0
      %1678 = vmatpush2.msra.mxu0 0.0
      %1679 = vmatprep.subr.mxu0 0.0
      %1680 = vmatpush2.msra.mxu0 0.0
      %1681 = vmatprep.subr.mxu0 0.0
      %1682 = vmatpush2.msra.mxu0 0.0
      %1683 = vmatprep.subr.mxu0 0.0
      %1684 = vmatpush2.msra.mxu0 0.0
      %1685 = vmatprep.subr.mxu0 0.0
      %1686 = vmatpush2.msra.mxu0 0.0
      %1687 = vmatprep.subr.mxu0 0.0
      %1688 = vmatpush2.msra.mxu0 0.0
      %1689 = vmatprep.subr.mxu0 0.0
      %1690 = vmatpush2.msra.mxu0 0.0
      %1691 = vmatprep.subr.mxu0 0.0
      %1692 = vmatpush2.msra.mxu0 0.0
      %1693 = vmatprep.subr.mxu0 0.0
      %1694 = vmatpush2.msra.mxu0 0.0
      %1695 = vmatprep.subr.mxu0 0.0
      %1696 = vmatpush2.msra.mxu0 0.0
      %1697 = vmatprep.subr.mxu0 0.0
      %1698 = vmatpush2.msra.mxu0 0.0
      %1699 = vmatprep.subr.mxu0 0.0
      %1700 = vmatpush2.msra.mxu0 0.0
      %1701 = vmatprep.subr.mxu0 0.0
      %1702 = vmatpush2.msra.mxu0 0.0
      %1703 = vmatprep.mubr.f32.mxu0 0.0
      %1704 = vmatmul.mubr.f32.gmra.mxu0 %v1617
      %v1705 = vpop.f32.mrf.mxu0
      %v1706 = vadd.f32 %v1638, %v1705
      %v1707 = vpop.f32.mrf.mxu0
      %1708 = vdwg.mxu0
      %v1709 = vmul.f32 %v1706, %v1599
      %v1710 = vld [vmem:[%s10] sm:$0xff]
      %v1711 = vld [vmem:[%s10 + $0x8] sm:$0xff]
      %v1712 = vld [vmem:[%s10 + $0x10] sm:$0xff]
      %v1713 = vld [vmem:[%s10 + $0x18] sm:$0xff]
      %v1714 = vld [vmem:[%s10 + $0x20] sm:$0xff]
      %v1715 = vld [vmem:[%s10 + $0x28] sm:$0xff]
      %v1716 = vld [vmem:[%s10 + $0x30] sm:$0xff]
      %v1717 = vld [vmem:[%s10 + $0x38] sm:$0xff]
      %1718 = vxpose.xlu0.b32.start [1/16] %v1710, 128
      %1719 = vxpose.xlu0.b32.cont [2/16] %v1711, 128
      %1720 = vxpose.xlu0.b32.cont [3/16] %v1712, 128
      %1721 = vxpose.xlu0.b32.cont [4/16] %v1713, 128
      %1722 = vxpose.xlu0.b32.cont [5/16] %v1714, 128
      %1723 = vxpose.xlu0.b32.cont [6/16] %v1715, 128
      %1724 = vxpose.xlu0.b32.cont [7/16] %v1716, 128
      %1725 = vxpose.xlu0.b32.cont [8/16] %v1717, 128
      %1726 = vxpose.xlu0.b32.cont [9/16] 0.0, 128
      %1727 = vxpose.xlu0.b32.cont [10/16] 0.0, 128
      %1728 = vxpose.xlu0.b32.cont [11/16] 0.0, 128
      %1729 = vxpose.xlu0.b32.cont [12/16] 0.0, 128
      %1730 = vxpose.xlu0.b32.cont [13/16] 0.0, 128
      %1731 = vxpose.xlu0.b32.cont [14/16] 0.0, 128
      %1732 = vxpose.xlu0.b32.cont [15/16] 0.0, 128
      %1733 = vxpose.xlu0.b32.end [16/16] 0.0, 128
      %v1734 = vpop.trf.xlu0
      %v1735 = vpop.trf.xlu0
      %v1736 = vpop.trf.xlu0
      %v1737 = vpop.trf.xlu0
      %v1738 = vpop.trf.xlu0
      %v1739 = vpop.trf.xlu0
      %v1740 = vpop.trf.xlu0
      %v1741 = vpop.trf.xlu0
      %v1742 = vpop.trf.xlu0
      %v1743 = vpop.trf.xlu0
      %v1744 = vpop.trf.xlu0
      %v1745 = vpop.trf.xlu0
      %v1746 = vpop.trf.xlu0
      %v1747 = vpop.trf.xlu0
      %v1748 = vpop.trf.xlu0
      %v1749 = vpop.trf.xlu0
      %v1751 = vsel %vm574, %v1734, 0
      %v1754 = vsel %vm574, %v1735, 0
      %v1757 = vsel %vm574, %v1709, 0
      %1759 = vmatprep.subr.mxu0 0.0
      %1760 = vmatpush1.xpose.msra.mxu0 0.0
      %1761 = vmatprep.subr.mxu0 0.0
      %1762 = vmatpush1.xpose.msra.mxu0 0.0
      %1763 = vmatprep.subr.mxu0 0.0
      %1764 = vmatpush1.xpose.msra.mxu0 0.0
      %1765 = vmatprep.subr.mxu0 0.0
      %1766 = vmatpush1.xpose.msra.mxu0 0.0
      %1767 = vmatprep.subr.mxu0 0.0
      %1768 = vmatpush1.xpose.msra.mxu0 0.0
      %1769 = vmatprep.subr.mxu0 0.0
      %1770 = vmatpush1.xpose.msra.mxu0 0.0
      %1771 = vmatprep.subr.mxu0 0.0
      %1772 = vmatpush1.xpose.msra.mxu0 0.0
      %1773 = vmatprep.subr.mxu0 0.0
      %1774 = vmatpush1.xpose.msra.mxu0 0.0
      %1775 = vmatprep.subr.mxu0 0.0
      %1776 = vmatpush1.xpose.msra.mxu0 0.0
      %1777 = vmatprep.subr.mxu0 0.0
      %1778 = vmatpush1.xpose.msra.mxu0 0.0
      %1779 = vmatprep.subr.mxu0 0.0
      %1780 = vmatpush1.xpose.msra.mxu0 0.0
      %1781 = vmatprep.subr.mxu0 0.0
      %1782 = vmatpush1.xpose.msra.mxu0 0.0
      %1783 = vmatprep.subr.mxu0 0.0
      %1784 = vmatpush1.xpose.msra.mxu0 0.0
      %1785 = vmatprep.subr.mxu0 0.0
      %1786 = vmatpush1.xpose.msra.mxu0 0.0
      %1787 = vmatprep.subr.mxu0 0.0
      %1788 = vmatpush1.xpose.msra.mxu0 0.0
      %1789 = vmatprep.subr.mxu0 0.0
      %1790 = vmatpush1.xpose.msra.mxu0 %v1757
      %1791 = vmatprep.subr.mxu0 0.0
      %1792 = vmatpush2.xpose.msra.mxu0 0.0
      %1793 = vmatprep.subr.mxu0 0.0
      %1794 = vmatpush2.xpose.msra.mxu0 0.0
      %1795 = vmatprep.subr.mxu0 0.0
      %1796 = vmatpush2.xpose.msra.mxu0 0.0
      %1797 = vmatprep.subr.mxu0 0.0
      %1798 = vmatpush2.xpose.msra.mxu0 0.0
      %1799 = vmatprep.subr.mxu0 0.0
      %1800 = vmatpush2.xpose.msra.mxu0 0.0
      %1801 = vmatprep.subr.mxu0 0.0
      %1802 = vmatpush2.xpose.msra.mxu0 0.0
      %1803 = vmatprep.subr.mxu0 0.0
      %1804 = vmatpush2.xpose.msra.mxu0 0.0
      %1805 = vmatprep.subr.mxu0 0.0
      %1806 = vmatpush2.xpose.msra.mxu0 0.0
      %1807 = vmatprep.subr.mxu0 0.0
      %1808 = vmatpush2.xpose.msra.mxu0 0.0
      %1809 = vmatprep.subr.mxu0 0.0
      %1810 = vmatpush2.xpose.msra.mxu0 0.0
      %1811 = vmatprep.subr.mxu0 0.0
      %1812 = vmatpush2.xpose.msra.mxu0 0.0
      %1813 = vmatprep.subr.mxu0 0.0
      %1814 = vmatpush2.xpose.msra.mxu0 0.0
      %1815 = vmatprep.subr.mxu0 0.0
      %1816 = vmatpush2.xpose.msra.mxu0 0.0
      %1817 = vmatprep.subr.mxu0 0.0
      %1818 = vmatpush2.xpose.msra.mxu0 0.0
      %1819 = vmatprep.subr.mxu0 0.0
      %1820 = vmatpush2.xpose.msra.mxu0 0.0
      %1821 = vmatprep.subr.mxu0 0.0
      %1822 = vmatpush2.xpose.msra.mxu0 0.0
      %1823 = vmatprep.mubr.f32.mxu0 0.0
      %1824 = vmatmul.mubr.f32.gmra.mxu0 %v1751
      %v1825 = vpop.f32.mrf.mxu0
      %v1826 = vadd.f32 0.0, %v1825
      %v1827 = vpop.f32.mrf.mxu0
      %1828 = vmatprep.mubr.f32.mxu0 0.0
      %1829 = vmatmul.mubr.f32.gmra.mxu0 %v1754
      %v1830 = vpop.f32.mrf.mxu0
      %v1831 = vadd.f32 0.0, %v1830
      %v1832 = vpop.f32.mrf.mxu0
      %1833 = vdwg.mxu0
      %vm1834 = vcmask 39936
      %v1835 = vsel %vm1834, %v1826, -inf
      %1836 = vmax.xlane.f32.xlu0 %v1835
      %v1837 = vpop.xlane.xlu0 %1836
      %vm1838 = vcmask 32768
      %v1839 = vsel %vm1838, %v1831, -inf
      %1840 = vmax.xlane.f32.xlu0 %v1839
      %v1841 = vpop.xlane.xlu0 %1840
      %v1842 = vsub.f32 %v1826, %v1837
      %v1843 = vsub.f32 %v1831, %v1841
      %v1844 = vmul.f32 %v1842, 1.442695
      %v1845 = vpow.pop %v1844
      %v1846 = vmul.f32 %v1843, 1.442695
      %v1847 = vpow.pop %v1846
      %v1848 = vsel %vm1834, %v1845, 0.0
      %1849 = vadd.xlane.f32.xlu0 %v1848
      %v1850 = vpop.xlane.xlu0 %1849
      %v1851 = vsel %vm1838, %v1847, 0.0
      %1852 = vadd.xlane.f32.xlu0 %v1851
      %v1853 = vpop.xlane.xlu0 %1852
      %v1854 = vrcp.pop %v1850
      %v1855 = vmul.f32 %v1845, %v1854
      %v1856 = vrcp.pop %v1853
      %v1857 = vmul.f32 %v1847, %v1856
      %v1858 = vld [vmem:[%s11] sm:$0xff]
      %v1859 = vld [vmem:[%s11 + $0x8] sm:$0xff]
      %v1860 = vld [vmem:[%s11 + $0x10] sm:$0xff]
      %v1861 = vld [vmem:[%s11 + $0x18] sm:$0xff]
      %v1862 = vld [vmem:[%s11 + $0x20] sm:$0xff]
      %v1863 = vld [vmem:[%s11 + $0x28] sm:$0xff]
      %v1864 = vld [vmem:[%s11 + $0x30] sm:$0xff]
      %v1865 = vld [vmem:[%s11 + $0x38] sm:$0xff]
      %1866 = vmatprep.subr.mxu0 0.0
      %1867 = vmatpush1.msra.mxu0 0.0
      %1868 = vmatprep.subr.mxu0 0.0
      %1869 = vmatpush1.msra.mxu0 0.0
      %1870 = vmatprep.subr.mxu0 0.0
      %1871 = vmatpush1.msra.mxu0 0.0
      %1872 = vmatprep.subr.mxu0 0.0
      %1873 = vmatpush1.msra.mxu0 0.0
      %1874 = vmatprep.subr.mxu0 0.0
      %1875 = vmatpush1.msra.mxu0 0.0
      %1876 = vmatprep.subr.mxu0 0.0
      %1877 = vmatpush1.msra.mxu0 0.0
      %1878 = vmatprep.subr.mxu0 0.0
      %1879 = vmatpush1.msra.mxu0 0.0
      %1880 = vmatprep.subr.mxu0 0.0
      %1881 = vmatpush1.msra.mxu0 0.0
      %1882 = vmatprep.subr.mxu0 0.0
      %1883 = vmatpush1.msra.mxu0 %v1865
      %1884 = vmatprep.subr.mxu0 0.0
      %1885 = vmatpush1.msra.mxu0 %v1864
      %1886 = vmatprep.subr.mxu0 0.0
      %1887 = vmatpush1.msra.mxu0 %v1863
      %1888 = vmatprep.subr.mxu0 0.0
      %1889 = vmatpush1.msra.mxu0 %v1862
      %1890 = vmatprep.subr.mxu0 0.0
      %1891 = vmatpush1.msra.mxu0 %v1861
      %1892 = vmatprep.subr.mxu0 0.0
      %1893 = vmatpush1.msra.mxu0 %v1860
      %1894 = vmatprep.subr.mxu0 0.0
      %1895 = vmatpush1.msra.mxu0 %v1859
      %1896 = vmatprep.subr.mxu0 0.0
      %1897 = vmatpush1.msra.mxu0 %v1858
      %1898 = vmatprep.subr.mxu0 0.0
      %1899 = vmatpush2.msra.mxu0 0.0
      %1900 = vmatprep.subr.mxu0 0.0
      %1901 = vmatpush2.msra.mxu0 0.0
      %1902 = vmatprep.subr.mxu0 0.0
      %1903 = vmatpush2.msra.mxu0 0.0
      %1904 = vmatprep.subr.mxu0 0.0
      %1905 = vmatpush2.msra.mxu0 0.0
      %1906 = vmatprep.subr.mxu0 0.0
      %1907 = vmatpush2.msra.mxu0 0.0
      %1908 = vmatprep.subr.mxu0 0.0
      %1909 = vmatpush2.msra.mxu0 0.0
      %1910 = vmatprep.subr.mxu0 0.0
      %1911 = vmatpush2.msra.mxu0 0.0
      %1912 = vmatprep.subr.mxu0 0.0
      %1913 = vmatpush2.msra.mxu0 0.0
      %1914 = vmatprep.subr.mxu0 0.0
      %1915 = vmatpush2.msra.mxu0 0.0
      %1916 = vmatprep.subr.mxu0 0.0
      %1917 = vmatpush2.msra.mxu0 0.0
      %1918 = vmatprep.subr.mxu0 0.0
      %1919 = vmatpush2.msra.mxu0 0.0
      %1920 = vmatprep.subr.mxu0 0.0
      %1921 = vmatpush2.msra.mxu0 0.0
      %1922 = vmatprep.subr.mxu0 0.0
      %1923 = vmatpush2.msra.mxu0 0.0
      %1924 = vmatprep.subr.mxu0 0.0
      %1925 = vmatpush2.msra.mxu0 0.0
      %1926 = vmatprep.subr.mxu0 0.0
      %1927 = vmatpush2.msra.mxu0 0.0
      %1928 = vmatprep.subr.mxu0 0.0
      %1929 = vmatpush2.msra.mxu0 0.0
      %1930 = vmatprep.mubr.f32.mxu0 0.0
      %1931 = vmatmul.mubr.f32.gmra.mxu0 %v1757
      %v1932 = vpop.f32.mrf.mxu0
      %v1933 = vadd.f32 0.0, %v1932
      %v1934 = vpop.f32.mrf.mxu0
      %1935 = vdwg.mxu0
      %v1937 = vsel %vm1834, %v1855, 0
      %v1940 = vsel %vm1834, %v1857, 0
      %vm1942 = vcmask 1044480
      %v1944 = vsel %vm1942, %v1933, 0
      %1946 = vmatprep.subr.mxu0 0.0
      %1947 = vmatpush1.msra.mxu0 0.0
      %1948 = vmatprep.subr.mxu0 0.0
      %1949 = vmatpush1.msra.mxu0 0.0
      %1950 = vmatprep.subr.mxu0 0.0
      %1951 = vmatpush1.msra.mxu0 0.0
      %1952 = vmatprep.subr.mxu0 0.0
      %1953 = vmatpush1.msra.mxu0 0.0
      %1954 = vmatprep.subr.mxu0 0.0
      %1955 = vmatpush1.msra.mxu0 0.0
      %1956 = vmatprep.subr.mxu0 0.0
      %1957 = vmatpush1.msra.mxu0 0.0
      %1958 = vmatprep.subr.mxu0 0.0
      %1959 = vmatpush1.msra.mxu0 0.0
      %1960 = vmatprep.subr.mxu0 0.0
      %1961 = vmatpush1.msra.mxu0 0.0
      %1962 = vmatprep.subr.mxu0 0.0
      %1963 = vmatpush1.msra.mxu0 0.0
      %1964 = vmatprep.subr.mxu0 0.0
      %1965 = vmatpush1.msra.mxu0 0.0
      %1966 = vmatprep.subr.mxu0 0.0
      %1967 = vmatpush1.msra.mxu0 0.0
      %1968 = vmatprep.subr.mxu0 0.0
      %1969 = vmatpush1.msra.mxu0 0.0
      %1970 = vmatprep.subr.mxu0 0.0
      %1971 = vmatpush1.msra.mxu0 0.0
      %1972 = vmatprep.subr.mxu0 0.0
      %1973 = vmatpush1.msra.mxu0 0.0
      %1974 = vmatprep.subr.mxu0 0.0
      %1975 = vmatpush1.msra.mxu0 0.0
      %1976 = vmatprep.subr.mxu0 0.0
      %1977 = vmatpush1.msra.mxu0 %v1944
      %1978 = vmatprep.subr.mxu0 0.0
      %1979 = vmatpush2.msra.mxu0 0.0
      %1980 = vmatprep.subr.mxu0 0.0
      %1981 = vmatpush2.msra.mxu0 0.0
      %1982 = vmatprep.subr.mxu0 0.0
      %1983 = vmatpush2.msra.mxu0 0.0
      %1984 = vmatprep.subr.mxu0 0.0
      %1985 = vmatpush2.msra.mxu0 0.0
      %1986 = vmatprep.subr.mxu0 0.0
      %1987 = vmatpush2.msra.mxu0 0.0
      %1988 = vmatprep.subr.mxu0 0.0
      %1989 = vmatpush2.msra.mxu0 0.0
      %1990 = vmatprep.subr.mxu0 0.0
      %1991 = vmatpush2.msra.mxu0 0.0
      %1992 = vmatprep.subr.mxu0 0.0
      %1993 = vmatpush2.msra.mxu0 0.0
      %1994 = vmatprep.subr.mxu0 0.0
      %1995 = vmatpush2.msra.mxu0 0.0
      %1996 = vmatprep.subr.mxu0 0.0
      %1997 = vmatpush2.msra.mxu0 0.0
      %1998 = vmatprep.subr.mxu0 0.0
      %1999 = vmatpush2.msra.mxu0 0.0
      %2000 = vmatprep.subr.mxu0 0.0
      %2001 = vmatpush2.msra.mxu0 0.0
      %2002 = vmatprep.subr.mxu0 0.0
      %2003 = vmatpush2.msra.mxu0 0.0
      %2004 = vmatprep.subr.mxu0 0.0
      %2005 = vmatpush2.msra.mxu0 0.0
      %2006 = vmatprep.subr.mxu0 0.0
      %2007 = vmatpush2.msra.mxu0 0.0
      %2008 = vmatprep.subr.mxu0 0.0
      %2009 = vmatpush2.msra.mxu0 0.0
      %2010 = vmatprep.mubr.f32.mxu0 0.0
      %2011 = vmatmul.mubr.f32.gmra.mxu0 %v1937
      %v2012 = vpop.f32.mrf.mxu0
      %v2013 = vadd.f32 0.0, %v2012
      %v2014 = vpop.f32.mrf.mxu0
      %2015 = vmatprep.mubr.f32.mxu0 0.0
      %2016 = vmatmul.mubr.f32.gmra.mxu0 %v1940
      %v2017 = vpop.f32.mrf.mxu0
      %v2018 = vadd.f32 0.0, %v2017
      %v2019 = vpop.f32.mrf.mxu0
      %2020 = vdwg.mxu0
      %v2021 = vld [vmem:[%s2] sm:$0xff]
      %v2022 = vld [vmem:[%s2 + $0x8] sm:$0x1]
      %2025 = vrot.lane.b32.xlu0 %v539, 64
      %v2026 = vpop.permute.xlu0 %2025
      %2027 = vrot.lane.b32.xlu0 %v544, 64
      %v2028 = vpop.permute.xlu0 %2027
      %2033 = vrot.lane.b32.xlu0 %v441, 64
      %v2034 = vpop.permute.xlu0 %2033
      %2035 = vrot.lane.b32.xlu0 %v442, 64
      %v2036 = vpop.permute.xlu0 %2035
      %v2039 = vsel %vm574, %v2026, %v2034
      %v2040 = vsel %vm574, %v2028, %v2036
      %vm2041 = vcmask 72704
      %v2043 = vsel %vm2041, %v2021, 0
      %v2046 = vsel %vm2041, %v2022, 0
      %v2049 = vsel %vm1073, %v2040, 0
      %2051 = vmatprep.subr.mxu0 0.0
      %2052 = vmatpush1.msra.mxu0 0.0
      %2053 = vmatprep.subr.mxu0 0.0
      %2054 = vmatpush1.msra.mxu0 0.0
      %2055 = vmatprep.subr.mxu0 0.0
      %2056 = vmatpush1.msra.mxu0 0.0
      %2057 = vmatprep.subr.mxu0 0.0
      %2058 = vmatpush1.msra.mxu0 0.0
      %2059 = vmatprep.subr.mxu0 0.0
      %2060 = vmatpush1.msra.mxu0 0.0
      %2061 = vmatprep.subr.mxu0 0.0
      %2062 = vmatpush1.msra.mxu0 0.0
      %2063 = vmatprep.subr.mxu0 0.0
      %2064 = vmatpush1.msra.mxu0 0.0
      %2065 = vmatprep.subr.mxu0 0.0
      %2066 = vmatpush1.msra.mxu0 0.0
      %2067 = vmatprep.subr.mxu0 0.0
      %2068 = vmatpush1.msra.mxu0 0.0
      %2069 = vmatprep.subr.mxu0 0.0
      %2070 = vmatpush1.msra.mxu0 0.0
      %2071 = vmatprep.subr.mxu0 0.0
      %2072 = vmatpush1.msra.mxu0 0.0
      %2073 = vmatprep.subr.mxu0 0.0
      %2074 = vmatpush1.msra.mxu0 0.0
      %2075 = vmatprep.subr.mxu0 0.0
      %2076 = vmatpush1.msra.mxu0 0.0
      %2077 = vmatprep.subr.mxu0 0.0
      %2078 = vmatpush1.msra.mxu0 0.0
      %2079 = vmatprep.subr.mxu0 0.0
      %2080 = vmatpush1.msra.mxu0 %v2049
      %2081 = vmatprep.subr.mxu0 0.0
      %2082 = vmatpush1.msra.mxu0 %v2039
      %2083 = vmatprep.subr.mxu0 0.0
      %2084 = vmatpush2.msra.mxu0 0.0
      %2085 = vmatprep.subr.mxu0 0.0
      %2086 = vmatpush2.msra.mxu0 0.0
      %2087 = vmatprep.subr.mxu0 0.0
      %2088 = vmatpush2.msra.mxu0 0.0
      %2089 = vmatprep.subr.mxu0 0.0
      %2090 = vmatpush2.msra.mxu0 0.0
      %2091 = vmatprep.subr.mxu0 0.0
      %2092 = vmatpush2.msra.mxu0 0.0
      %2093 = vmatprep.subr.mxu0 0.0
      %2094 = vmatpush2.msra.mxu0 0.0
      %2095 = vmatprep.subr.mxu0 0.0
      %2096 = vmatpush2.msra.mxu0 0.0
      %2097 = vmatprep.subr.mxu0 0.0
      %2098 = vmatpush2.msra.mxu0 0.0
      %2099 = vmatprep.subr.mxu0 0.0
      %2100 = vmatpush2.msra.mxu0 0.0
      %2101 = vmatprep.subr.mxu0 0.0
      %2102 = vmatpush2.msra.mxu0 0.0
      %2103 = vmatprep.subr.mxu0 0.0
      %2104 = vmatpush2.msra.mxu0 0.0
      %2105 = vmatprep.subr.mxu0 0.0
      %2106 = vmatpush2.msra.mxu0 0.0
      %2107 = vmatprep.subr.mxu0 0.0
      %2108 = vmatpush2.msra.mxu0 0.0
      %2109 = vmatprep.subr.mxu0 0.0
      %2110 = vmatpush2.msra.mxu0 0.0
      %2111 = vmatprep.subr.mxu0 0.0
      %2112 = vmatpush2.msra.mxu0 0.0
      %2113 = vmatprep.subr.mxu0 0.0
      %2114 = vmatpush2.msra.mxu0 0.0
      %2115 = vmatprep.mubr.f32.mxu0 0.0
      %2116 = vmatmul.mubr.f32.gmra.mxu0 %v2043
      %v2117 = vpop.f32.mrf.mxu0
      %v2118 = vadd.f32 0.0, %v2117
      %v2119 = vpop.f32.mrf.mxu0
      %2120 = vmatprep.mubr.f32.mxu0 0.0
      %2121 = vmatmul.mubr.f32.gmra.mxu0 %v2046
      %v2122 = vpop.f32.mrf.mxu0
      %v2123 = vadd.f32 0.0, %v2122
      %v2124 = vpop.f32.mrf.mxu0
      %2125 = vdwg.mxu0
      %v2126 = vsub.f32 0.0, %v2118
      %v2127 = vsub.f32 0.0, %v2123
      %v2128 = vmul.f32 %v2126, 1.442695
      %v2129 = vpow.pop %v2128
      %v2130 = vmul.f32 %v2127, 1.442695
      %v2131 = vpow.pop %v2130
      %v2132 = vadd.f32 %v2129, 1.0
      %v2133 = vadd.f32 %v2131, 1.0
      %v2134 = vrcp.pop %v2132
      %v2135 = vmul.f32 1.0, %v2134
      %v2136 = vrcp.pop %v2133
      %v2137 = vmul.f32 1.0, %v2136
      %v2138 = vmul.f32 %v2118, %v2135
      %v2139 = vmul.f32 %v2123, %v2137
      %v2140 = vld [vmem:[%s12] sm:$0xff]
      %v2141 = vld [vmem:[%s12 + $0x8] sm:$0xff]
      %v2142 = vld [vmem:[%s12 + $0x10] sm:$0xff]
      %v2143 = vld [vmem:[%s12 + $0x18] sm:$0xff]
      %v2144 = vld [vmem:[%s12 + $0x20] sm:$0xff]
      %v2145 = vld [vmem:[%s12 + $0x28] sm:$0xff]
      %v2146 = vld [vmem:[%s12 + $0x30] sm:$0xff]
      %v2147 = vld [vmem:[%s12 + $0x38] sm:$0xff]
      %v2148 = vld [vmem:[%s12 + $0x40] sm:$0xff]
      %v2149 = vld [vmem:[%s12 + $0x48] sm:$0xff]
      %v2150 = vld [vmem:[%s12 + $0x50] sm:$0xff]
      %v2151 = vld [vmem:[%s12 + $0x58] sm:$0xff]
      %v2152 = vld [vmem:[%s12 + $0x60] sm:$0x1]
      %v2153 = vmul.f32 %v2013, %v2138
      %v2154 = vmul.f32 %v2018, %v2139
      %v2155 = vsel %vm574, %v2153, %v2118
      %v2156 = vsel %vm574, %v2154, %v2123
      %v2157 = vlaneseq
      %v2158 = vshrl.u32 %v2157, 7
      %v2159 = vsub.s32 0, %v2158
      %v2160 = vrot.slane %v2152, %v2159
      %vm2161 = vcmask 785408
      %v2163 = vsel %vm2161, %v2155, 0
      %v2166 = vsel %vm2161, %v2156, 0
      %2168 = vmatprep.subr.mxu0 0.0
      %2169 = vmatpush1.msra.mxu0 0.0
      %2170 = vmatprep.subr.mxu0 0.0
      %2171 = vmatpush1.msra.mxu0 0.0
      %2172 = vmatprep.subr.mxu0 0.0
      %2173 = vmatpush1.msra.mxu0 0.0
      %2174 = vmatprep.subr.mxu0 0.0
      %2175 = vmatpush1.msra.mxu0 0.0
      %2176 = vmatprep.subr.mxu0 0.0
      %2177 = vmatpush1.msra.mxu0 %v2151
      %2178 = vmatprep.subr.mxu0 0.0
      %2179 = vmatpush1.msra.mxu0 %v2150
      %2180 = vmatprep.subr.mxu0 0.0
      %2181 = vmatpush1.msra.mxu0 %v2149
      %2182 = vmatprep.subr.mxu0 0.0
      %2183 = vmatpush1.msra.mxu0 %v2148
      %2184 = vmatprep.subr.mxu0 0.0
      %2185 = vmatpush1.msra.mxu0 %v2147
      %2186 = vmatprep.subr.mxu0 0.0
      %2187 = vmatpush1.msra.mxu0 %v2146
      %2188 = vmatprep.subr.mxu0 0.0
      %2189 = vmatpush1.msra.mxu0 %v2145
      %2190 = vmatprep.subr.mxu0 0.0
      %2191 = vmatpush1.msra.mxu0 %v2144
      %2192 = vmatprep.subr.mxu0 0.0
      %2193 = vmatpush1.msra.mxu0 %v2143
      %2194 = vmatprep.subr.mxu0 0.0
      %2195 = vmatpush1.msra.mxu0 %v2142
      %2196 = vmatprep.subr.mxu0 0.0
      %2197 = vmatpush1.msra.mxu0 %v2141
      %2198 = vmatprep.subr.mxu0 0.0
      %2199 = vmatpush1.msra.mxu0 %v2140
      %2200 = vmatprep.subr.mxu0 0.0
      %2201 = vmatpush2.msra.mxu0 0.0
      %2202 = vmatprep.subr.mxu0 0.0
      %2203 = vmatpush2.msra.mxu0 0.0
      %2204 = vmatprep.subr.mxu0 0.0
      %2205 = vmatpush2.msra.mxu0 0.0
      %2206 = vmatprep.subr.mxu0 0.0
      %2207 = vmatpush2.msra.mxu0 0.0
      %2208 = vmatprep.subr.mxu0 0.0
      %2209 = vmatpush2.msra.mxu0 0.0
      %2210 = vmatprep.subr.mxu0 0.0
      %2211 = vmatpush2.msra.mxu0 0.0
      %2212 = vmatprep.subr.mxu0 0.0
      %2213 = vmatpush2.msra.mxu0 0.0
      %2214 = vmatprep.subr.mxu0 0.0
      %2215 = vmatpush2.msra.mxu0 0.0
      %2216 = vmatprep.subr.mxu0 0.0
      %2217 = vmatpush2.msra.mxu0 0.0
      %2218 = vmatprep.subr.mxu0 0.0
      %2219 = vmatpush2.msra.mxu0 0.0
      %2220 = vmatprep.subr.mxu0 0.0
      %2221 = vmatpush2.msra.mxu0 0.0
      %2222 = vmatprep.subr.mxu0 0.0
      %2223 = vmatpush2.msra.mxu0 0.0
      %2224 = vmatprep.subr.mxu0 0.0
      %2225 = vmatpush2.msra.mxu0 0.0
      %2226 = vmatprep.subr.mxu0 0.0
      %2227 = vmatpush2.msra.mxu0 0.0
      %2228 = vmatprep.subr.mxu0 0.0
      %2229 = vmatpush2.msra.mxu0 0.0
      %2230 = vmatprep.subr.mxu0 0.0
      %2231 = vmatpush2.msra.mxu0 0.0
      %2232 = vmatprep.mubr.f32.mxu0 0.0
      %2233 = vmatmul.mubr.f32.gmra.mxu0 %v2163
      %v2234 = vpop.f32.mrf.mxu0
      %v2235 = vadd.f32 %v2160, %v2234
      %v2236 = vpop.f32.mrf.mxu0
      %2237 = vmatprep.mubr.f32.mxu0 0.0
      %2238 = vmatmul.mubr.f32.gmra.mxu0 %v2166
      %v2239 = vpop.f32.mrf.mxu0
      %v2240 = vadd.f32 %v2160, %v2239
      %v2241 = vpop.f32.mrf.mxu0
      %2242 = vdwg.mxu0
      %2243 = vst.msk [vmem:[%s440] sm:$0xff] %vm445, %v2235
      %2244 = vst.msk [vmem:[%s440 + $0x8] sm:$0x1] %vm449, %v2240
      %p2245 = scmp.lt.s32.totalorder %s24, 1
      %s2246 = scalar_select %p2245, %s24, 1
      %s2247 = smul.addr %s2246, 2
      %s2248 = smul.addr %s2247, 8
      %s2249 = scalar_lea.vmem %s13, %s2248
      // Predicated region
      $region73: #{residual_block.1} parent=71 // pred_check
        %p2250 = pneg %p320
      $region74: #{residual_block.1} parent=71 // pred_check_branch
        %2252 = sbr.rel (%p2250) target = $region76
      $region75: #{residual_block.1} parent=71 // pred_region
        _
      $region76: #{residual_block.1} parent=71 // pred_fallthru
        _
    $region72: #{residual_block.1} parent=5 // pred_fallthru
      _
    %p2253 = scmp.le.s32.totalorder 2, %s19
    // Predicated region
    $region77: #{residual_block.1} parent=5 // pred_check
      %p2254 = pneg %p2253
    $region78: #{residual_block.1} parent=5 // pred_check_branch
      %2256 = sbr.rel (%p2254) target = $region80
    $region79: #{residual_block.1} parent=5 // pred_region
      %s2257 = ssub.s32 %s19, 2
      // Predicated region
      $region81: #{residual_block.1} parent=79 // pred_check
        %p2258 = pneg %p326
      $region82: #{residual_block.1} parent=79 // pred_check_branch
        %2260 = sbr.rel (%p2258) target = $region84
      $region83: #{residual_block.1} parent=79 // pred_region
        %p2261 = scmp.lt.s32.totalorder %s25, 1
        %s2262 = scalar_select %p2261, %s25, 1
        %s2263 = smul.addr %s2262, 2
        %s2264 = smul.addr %s2263, 8
        %s2265 = scalar_lea.vmem %s13, %s2264
      $region84: #{residual_block.1} parent=79 // pred_fallthru
        _
    $region80: #{residual_block.1} parent=5 // pred_fallthru
      _
  $region6: #{residual_block.1} parent=0 // loop_footer
    %s23 = sadd.s32 1, %s19
  $region7: #{residual_block.1} parent=0 // loop_footer_branch
    %18 = sbr.rel target = $region3
  $region8: #{residual_block.1} parent=0 // loop_exit
    _

</llo_original>
